<compile_context>
chip_gen: v6e
topology: v6e:2x2x1
jax: 0.10.0
libtpu: 0.0.40
codegen_flags: <defaults>
</compile_context>

<pallas_src>
import functools

import jax
import jax.numpy as jnp
import numpy as np
from jax.experimental import pallas as pl
from jax.experimental.pallas import tpu as pltpu


def _cond_attn_kernel(num_heads,
                      h_dst_ref, h_all_ref, e_ref, mask_ref,
                      wqkv_ref, bqkv_ref, wc_ref, bc_ref,
                      wh_ref, bh_ref, wf_ref, bf_ref,
                      hout_ref, fused_ref):
    TM, D = h_dst_ref.shape
    N = h_all_ref.shape[0]
    H = num_heads
    Hd = D // H
    f32 = jnp.float32

    # ---- projections -------------------------------------------------------
    wqkv = wqkv_ref[...]
    bqkv = bqkv_ref[...]
    # k, v for every source node (whole graph, resident across the grid)
    kv = jnp.dot(h_all_ref[...], wqkv[:, D:], preferred_element_type=f32) + bqkv[:, D:]
    k = kv[:, :D]                                       # [N, D]
    v = kv[:, D:]                                       # [N, D]
    # q only for this dst tile
    q = jnp.dot(h_dst_ref[...], wqkv[:, :D], preferred_element_type=f32) + bqkv[:, :D]

    # gated conditional projection of the edge features for this dst tile
    e = e_ref[...]                                      # [TM*N, D]
    c = jnp.tanh(jnp.dot(e, wc_ref[...], preferred_element_type=f32) + bc_ref[...])

    # ---- raw score: score[(i,j), d] = q[i,d] * k[j,d] * c[(i,j), d] --------
    qk = (q[:, None, :] * k[None, :, :]).reshape(TM * N, D)
    score2 = qk * c                                     # [TM*N, D]

    # ---- single fused MXU pass over score2 ---------------------------------
    #   cols [0:H)        per-head logits (scale folded into the weights)
    #   cols [H:H+D)      e_proj output
    #   cols [H+D:H+D+Hd) mean over heads
    fused = jnp.dot(score2, wf_ref[...], preferred_element_type=f32) + bf_ref[...]
    fused_ref[...] = fused                              # lane-dense [TM*N, Cp] store

    # ---- edge softmax over incoming edges (src axis in lanes) --------------
    logits = jnp.swapaxes(fused[:, :H].reshape(TM, N, H), 1, 2)   # [TM, H, N]
    mask_b = (mask_ref[...] > 0.5)[:, None, :]                    # [TM, 1, N]
    lm = jnp.where(mask_b, logits, -1e30)
    m = jnp.max(lm, axis=-1, keepdims=True)
    p = jnp.exp(lm - m)                                 # masked lanes underflow to 0
    denom = jnp.sum(p, axis=-1, keepdims=True)          # >= 1 when the row has an edge
    attn = p * pl.reciprocal(denom, approx=True)        # [TM, H, N]
    # NOTE: a dst node with zero incoming edges yields a finite uniform row here;
    # the DGL reference produces NaN in that case (same hazard as the original).

    # ---- aggregation: per-head MXU contraction over the src axis -----------
    parts = []
    for hh in range(H):
        a_h = attn[:, hh, :]                            # [TM, N]
        v_h = v[:, hh * Hd:(hh + 1) * Hd]               # [N, Hd]
        parts.append(jnp.dot(a_h, v_h, preferred_element_type=f32))
    h_agg = jnp.concatenate(parts, axis=-1)             # [TM, D]

    hout_ref[...] = jnp.dot(h_agg, wh_ref[...], preferred_element_type=f32) + bh_ref[...]


def _round_up(x, m):
    return (x + m - 1) // m * m


def _pick_tile_dst(N, D, Cp, vmem_budget_bytes):
    # rough live f32 bytes per dst row per block (e tile + c + score2 + fused),
    # x2 for double-buffered DMA.
    per_row = 2 * 4 * N * (3 * D + 2 * Cp)
    tm = max(1, vmem_budget_bytes // max(per_row, 1))
    tm = min(tm, N)
    if N % 8 == 0:
        tm = max(8, (tm // 8) * 8)
        while N % tm:
            tm -= 8
        return int(tm)
    return int(N)   # tiny/odd graphs: single block


def conditional_attention(src, dst, h, e, params, num_heads, *, tile_dst=None,
                          vmem_budget_bytes=48 * 1024 * 1024):
    N, D = h.shape
    H = num_heads
    Hd = D // H
    scale = float(Hd) ** (-0.5)
    Cp = _round_up(H + D + Hd, 128)          # lane-dense fused-output width

    # glue: scatter COO edge features into a dense [N_dst*N_src, D] slab + mask.
    # TODO(synk): for sparse graphs, feed CSR row offsets via
    # PrefetchScalarGridSpec scalar prefetch instead of densifying to N^2 rows.
    e_dense = jnp.zeros((N, N, D), jnp.float32).at[dst, src].set(e).reshape(N * N, D)
    mask = jnp.zeros((N, N), jnp.float32).at[dst, src].set(1.0)

    # fused RHS: [rsum*scale | we | mmean | zero-pad] and its bias.
    d_idx = np.arange(D)
    rsum = (d_idx[:, None] // Hd == np.arange(H)[None, :]).astype(np.float32) * scale
    mmean = (d_idx[:, None] % Hd == np.arange(Hd)[None, :]).astype(np.float32) / H
    w_fused = jnp.zeros((D, Cp), jnp.float32)
    w_fused = w_fused.at[:, 0:H].set(jnp.asarray(rsum))
    w_fused = w_fused.at[:, H:H + D].set(params["we"])
    w_fused = w_fused.at[:, H + D:H + D + Hd].set(jnp.asarray(mmean))
    b_fused = jnp.zeros((1, Cp), jnp.float32).at[:, H:H + D].set(params["be"])

    if tile_dst is None:
        tile_dst = _pick_tile_dst(N, D, Cp, vmem_budget_bytes)
    TM = int(tile_dst)
    assert N % TM == 0, "tile_dst must divide the node count"
    n_tiles = N // TM

    def whole(x):
        nd = x.ndim
        return pl.BlockSpec(x.shape, lambda t, _nd=nd: (0,) * _nd)

    in_specs = [
        pl.BlockSpec((TM, D), lambda t: (t, 0)),         # h rows of the dst tile (q)
        whole(h),                                        # h whole (k, v)
        pl.BlockSpec((TM * N, D), lambda t: (t, 0)),     # dense edge slab rows
        pl.BlockSpec((TM, N), lambda t: (t, 0)),         # adjacency mask rows
        whole(params["wqkv"]), whole(params["bqkv"]),
        whole(params["wc"]), whole(params["bc"]),
        whole(params["wh"]), whole(params["bh"]),
        whole(w_fused), whole(b_fused),
    ]
    out_shapes = (jax.ShapeDtypeStruct((N, D), jnp.float32),
                  jax.ShapeDtypeStruct((N * N, Cp), jnp.float32))
    out_specs = (pl.BlockSpec((TM, D), lambda t: (t, 0)),
                 pl.BlockSpec((TM * N, Cp), lambda t: (t, 0)))

    flops = int(
        2 * N * N * D * D                # c projection
        + 2 * N * N * D * Cp             # fused score matmul
        + 4 * N * N * D                  # score product / softmax elementwise
        + 2 * N * N * D                  # per-head aggregation matmuls
        + n_tiles * 2 * N * (2 * D) * D  # k/v recomputed per dst tile
        + 2 * N * D * D                  # q projection
        + 2 * N * D * D)                 # h_proj
    transcendentals = int(N * N * D + N * N * H)
    bytes_accessed = int(4 * ((n_tiles + 1) * N * D + N * N * D + N * N
                              + 6 * D * D + D * Cp + 8 * D + Cp
                              + N * D + N * N * Cp))

    kern = functools.partial(_cond_attn_kernel, H)
    h_out, fused = pl.pallas_call(
        kern,
        out_shape=out_shapes,
        grid=(n_tiles,),
        in_specs=in_specs,
        out_specs=out_specs,
        compiler_params=pltpu.CompilerParams(
            dimension_semantics=("parallel",),
            vmem_limit_bytes=int(vmem_budget_bytes)),
        cost_estimate=pl.CostEstimate(flops=flops,
                                      transcendentals=transcendentals,
                                      bytes_accessed=bytes_accessed),
    )(h, h, e_dense, mask,
      params["wqkv"], params["bqkv"], params["wc"], params["bc"],
      params["wh"], params["bh"], w_fused, b_fused)

    # glue: gather per-edge outputs back into COO order and split the fused slab
    fused_edges = fused.reshape(N, N, Cp)[dst, src]      # [E, Cp]
    e_out = fused_edges[:, H:H + D]
    s_mean = fused_edges[:, H + D:H + D + Hd]
    return h_out, e_out, s_mean


def init_params(key, dim):
    ks = jax.random.split(key, 8)

    def lin(kw, kb, din, dout):
        bound = 1.0 / np.sqrt(din)
        w = jax.random.uniform(kw, (din, dout), jnp.float32, -bound, bound)
        b = jax.random.uniform(kb, (1, dout), jnp.float32, -bound, bound)
        return w, b

    wqkv, bqkv = lin(ks[0], ks[1], dim, 3 * dim)   # qkv_linear (use_bias=True)
    wc, bc = lin(ks[2], ks[3], dim, dim)           # c_linear
    wh, bh = lin(ks[4], ks[5], dim, dim)           # h_proj
    we, be = lin(ks[6], ks[7], dim, dim)           # e_proj
    return dict(wqkv=wqkv, bqkv=bqkv, wc=wc, bc=bc, wh=wh, bh=bh, we=we, be=be)


def ref_forward(src, dst, h, e, params, num_heads):
    """Pure-JAX edge-list reference mirroring the DGL semantics exactly."""
    N, D = h.shape
    E = e.shape[0]
    H = num_heads
    Hd = D // H
    scale = float(Hd) ** (-0.5)

    qkv = h @ params["wqkv"] + params["bqkv"]
    q = qkv[:, 0:D].reshape(N, H, Hd)
    k = qkv[:, D:2 * D].reshape(N, H, Hd)
    v = qkv[:, 2 * D:].reshape(N, H, Hd)
    c = jnp.tanh(e @ params["wc"] + params["bc"]).reshape(E, H, Hd)

    score = k[src] * q[dst] * c                                  # u_mul_v * c
    logits = score.sum(-1, keepdims=True) * scale                # [E, H, 1]
    mx = jax.ops.segment_max(logits, dst, num_segments=N)
    p = jnp.exp(logits - mx[dst])
    den = jax.ops.segment_sum(p, dst, num_segments=N)
    attn = p / den[dst]                                          # edge_softmax
    h_agg = jax.ops.segment_sum(v[src] * attn, dst, num_segments=N).reshape(N, D)
    h_out = h_agg @ params["wh"] + params["bh"]
    e_out = score.reshape(E, D) @ params["we"] + params["be"]
    s_mean = score.mean(axis=1)
    return h_out, e_out, s_mean


if __name__ == "__main__":
    N, dim, num_heads = 16, 32, 4

    # complete directed graph without self-loops (every node has incoming edges)
    src_l, dst_l = [], []
    for i in range(N):
        for j in range(N):
            if i != j:
                src_l.append(i)
                dst_l.append(j)
    src = jnp.asarray(src_l, jnp.int32)
    dst = jnp.asarray(dst_l, jnp.int32)
    E = int(src.shape[0])

    key = jax.random.PRNGKey(0)
    k_h, k_e, k_p = jax.random.split(key, 3)
    h = jax.random.normal(k_h, (N, dim), jnp.float32)
    e = jax.random.normal(k_e, (E, dim), jnp.float32)
    params = init_params(k_p, dim)

    # tile_dst=8 -> grid of 2 dst blocks (exercises the pipelined multi-block path)
    h_out, e_out, s_mean = conditional_attention(src, dst, h, e, params, num_heads,
                                                 tile_dst=8)
    jax.block_until_ready((h_out, e_out, s_mean))

    hr, er, sr = ref_forward(src, dst, h, e, params, num_heads)
    assert np.allclose(np.asarray(h_out), np.asarray(hr), rtol=2e-3, atol=2e-3)
    assert np.allclose(np.asarray(e_out), np.asarray(er), rtol=2e-3, atol=2e-3)
    assert np.allclose(np.asarray(s_mean), np.asarray(sr), rtol=2e-3, atol=2e-3)

    print("KERNEL_OK")
</pallas_src>

<mosaic_0001>
module attributes {stable_mosaic.version = 11 : i64} {
  func.func @_cond_attn_kernel(%arg0: i32, %arg1: memref<8x32xf32, #tpu.memory_space<vmem>>, %arg2: memref<16x32xf32, #tpu.memory_space<vmem>>, %arg3: memref<128x32xf32, #tpu.memory_space<vmem>>, %arg4: memref<8x16xf32, #tpu.memory_space<vmem>>, %arg5: memref<32x96xf32, #tpu.memory_space<vmem>>, %arg6: memref<1x96xf32, #tpu.memory_space<vmem>>, %arg7: memref<32x32xf32, #tpu.memory_space<vmem>>, %arg8: memref<1x32xf32, #tpu.memory_space<vmem>>, %arg9: memref<32x32xf32, #tpu.memory_space<vmem>>, %arg10: memref<1x32xf32, #tpu.memory_space<vmem>>, %arg11: memref<32x128xf32, #tpu.memory_space<vmem>>, %arg12: memref<1x128xf32, #tpu.memory_space<vmem>>, %arg13: memref<8x32xf32, #tpu.memory_space<vmem>>, %arg14: memref<128x128xf32, #tpu.memory_space<vmem>>) attributes {dimension_semantics = [#tpu.dimension_semantics<parallel>], iteration_bounds = array<i64: 2>, scalar_prefetch = 0 : i64, scratch_operands = 0 : i64, tpu.core_type = #tpu.core_type<tc>, window_params = [{transform_indices = @transform_0, window_bounds = array<i64: 8, 32>}, {pipeline_mode = #tpu.pipeline_mode<synchronous>, transform_indices = @transform_1, window_bounds = array<i64: 16, 32>}, {transform_indices = @transform_2, window_bounds = array<i64: 128, 32>}, {transform_indices = @transform_3, window_bounds = array<i64: 8, 16>}, {pipeline_mode = #tpu.pipeline_mode<synchronous>, transform_indices = @transform_4, window_bounds = array<i64: 32, 96>}, {pipeline_mode = #tpu.pipeline_mode<synchronous>, transform_indices = @transform_5, window_bounds = array<i64: 1, 96>}, {pipeline_mode = #tpu.pipeline_mode<synchronous>, transform_indices = @transform_6, window_bounds = array<i64: 32, 32>}, {pipeline_mode = #tpu.pipeline_mode<synchronous>, transform_indices = @transform_7, window_bounds = array<i64: 1, 32>}, {pipeline_mode = #tpu.pipeline_mode<synchronous>, transform_indices = @transform_8, window_bounds = array<i64: 32, 32>}, {pipeline_mode = #tpu.pipeline_mode<synchronous>, transform_indices = @transform_9, window_bounds = array<i64: 1, 32>}, {pipeline_mode = #tpu.pipeline_mode<synchronous>, transform_indices = @transform_10, window_bounds = array<i64: 32, 128>}, {pipeline_mode = #tpu.pipeline_mode<synchronous>, transform_indices = @transform_11, window_bounds = array<i64: 1, 128>}, {transform_indices = @transform_12, window_bounds = array<i64: 8, 32>}, {transform_indices = @transform_13, window_bounds = array<i64: 128, 128>}]} {
    %c0 = arith.constant 0 : index
    %c0_0 = arith.constant 0 : index
    %0 = vector.load %arg5[%c0, %c0_0] : memref<32x96xf32, #tpu.memory_space<vmem>>, vector<32x96xf32>
    %c0_1 = arith.constant 0 : index
    %c0_2 = arith.constant 0 : index
    %1 = vector.load %arg6[%c0_1, %c0_2] : memref<1x96xf32, #tpu.memory_space<vmem>>, vector<1x96xf32>
    %c0_3 = arith.constant 0 : index
    %c0_4 = arith.constant 0 : index
    %2 = vector.load %arg2[%c0_3, %c0_4] : memref<16x32xf32, #tpu.memory_space<vmem>>, vector<16x32xf32>
    %3 = vector.extract_strided_slice %0 {offsets = [0, 32], sizes = [32, 64], strides = [1, 1]} : vector<32x96xf32> to vector<32x64xf32>
    %cst = arith.constant dense<0.000000e+00> : vector<16x64xf32>
    %4 = tpu.matmul %2, %3, %cst {dimension_numbers = #tpu.dot_dimension_numbers<[1], [0], [0], [1], [0, 0, 1, 1], [], []>} : vector<16x32xf32>, vector<32x64xf32>, vector<16x64xf32> -> vector<16x64xf32>
    %5 = vector.extract_strided_slice %1 {offsets = [0, 32], sizes = [1, 64], strides = [1, 1]} : vector<1x96xf32> to vector<1x64xf32>
    %6 = vector.broadcast %5 : vector<1x64xf32> to vector<16x64xf32>
    %7 = arith.addf %4, %6 : vector<16x64xf32>
    %8 = vector.extract_strided_slice %7 {offsets = [0, 0], sizes = [16, 32], strides = [1, 1]} : vector<16x64xf32> to vector<16x32xf32>
    %9 = vector.extract_strided_slice %7 {offsets = [0, 32], sizes = [16, 32], strides = [1, 1]} : vector<16x64xf32> to vector<16x32xf32>
    %c0_5 = arith.constant 0 : index
    %c0_6 = arith.constant 0 : index
    %10 = vector.load %arg1[%c0_5, %c0_6] : memref<8x32xf32, #tpu.memory_space<vmem>>, vector<8x32xf32>
    %11 = vector.extract_strided_slice %0 {offsets = [0, 0], sizes = [32, 32], strides = [1, 1]} : vector<32x96xf32> to vector<32x32xf32>
    %cst_7 = arith.constant dense<0.000000e+00> : vector<8x32xf32>
    %12 = tpu.matmul %10, %11, %cst_7 {dimension_numbers = #tpu.dot_dimension_numbers<[1], [0], [0], [1], [0, 0, 1, 1], [], []>} : vector<8x32xf32>, vector<32x32xf32>, vector<8x32xf32> -> vector<8x32xf32>
    %13 = vector.extract_strided_slice %1 {offsets = [0, 0], sizes = [1, 32], strides = [1, 1]} : vector<1x96xf32> to vector<1x32xf32>
    %14 = vector.broadcast %13 : vector<1x32xf32> to vector<8x32xf32>
    %15 = arith.addf %12, %14 : vector<8x32xf32>
    %c0_8 = arith.constant 0 : index
    %c0_9 = arith.constant 0 : index
    %16 = vector.load %arg3[%c0_8, %c0_9] : memref<128x32xf32, #tpu.memory_space<vmem>>, vector<128x32xf32>
    %c0_10 = arith.constant 0 : index
    %c0_11 = arith.constant 0 : index
    %17 = vector.load %arg7[%c0_10, %c0_11] : memref<32x32xf32, #tpu.memory_space<vmem>>, vector<32x32xf32>
    %cst_12 = arith.constant dense<0.000000e+00> : vector<128x32xf32>
    %18 = tpu.matmul %16, %17, %cst_12 {dimension_numbers = #tpu.dot_dimension_numbers<[1], [0], [0], [1], [0, 0, 1, 1], [], []>} : vector<128x32xf32>, vector<32x32xf32>, vector<128x32xf32> -> vector<128x32xf32>
    %c0_13 = arith.constant 0 : index
    %c0_14 = arith.constant 0 : index
    %19 = vector.load %arg8[%c0_13, %c0_14] : memref<1x32xf32, #tpu.memory_space<vmem>>, vector<1x32xf32>
    %20 = vector.broadcast %19 : vector<1x32xf32> to vector<128x32xf32>
    %21 = arith.addf %18, %20 : vector<128x32xf32>
    %22 = math.tanh %21 : vector<128x32xf32>
    %23 = vector.shape_cast %15 : vector<8x32xf32> to vector<8x1x32xf32>
    %24 = vector.shape_cast %8 : vector<16x32xf32> to vector<1x16x32xf32>
    %25 = vector.broadcast %23 : vector<8x1x32xf32> to vector<8x16x32xf32>
    %26 = vector.broadcast %24 : vector<1x16x32xf32> to vector<8x16x32xf32>
    %27 = arith.mulf %25, %26 : vector<8x16x32xf32>
    %28 = vector.shape_cast %27 : vector<8x16x32xf32> to vector<128x32xf32>
    %29 = arith.mulf %28, %22 : vector<128x32xf32>
    %c0_15 = arith.constant 0 : index
    %c0_16 = arith.constant 0 : index
    %30 = vector.load %arg11[%c0_15, %c0_16] : memref<32x128xf32, #tpu.memory_space<vmem>>, vector<32x128xf32>
    %cst_17 = arith.constant dense<0.000000e+00> : vector<128x128xf32>
    %31 = tpu.matmul %29, %30, %cst_17 {dimension_numbers = #tpu.dot_dimension_numbers<[1], [0], [0], [1], [0, 0, 1, 1], [], []>} : vector<128x32xf32>, vector<32x128xf32>, vector<128x128xf32> -> vector<128x128xf32>
    %c0_18 = arith.constant 0 : index
    %c0_19 = arith.constant 0 : index
    %32 = vector.load %arg12[%c0_18, %c0_19] : memref<1x128xf32, #tpu.memory_space<vmem>>, vector<1x128xf32>
    %33 = vector.broadcast %32 : vector<1x128xf32> to vector<128x128xf32>
    %34 = arith.addf %31, %33 : vector<128x128xf32>
    %c0_20 = arith.constant 0 : index
    %c0_21 = arith.constant 0 : index
    %35 = vector.load %arg14[%c0_20, %c0_21] : memref<128x128xf32, #tpu.memory_space<vmem>>, vector<128x128xf32>
    tpu.vector_store %arg14[%c0_20, %c0_21], %34 {strides = array<i32>} : memref<128x128xf32, #tpu.memory_space<vmem>>, vector<128x128xf32>,
    %36 = vector.extract_strided_slice %34 {offsets = [0, 0], sizes = [128, 4], strides = [1, 1]} : vector<128x128xf32> to vector<128x4xf32>
    %37 = vector.shape_cast %36 : vector<128x4xf32> to vector<8x16x4xf32>
    %38 = tpu.transpose %37, [0, 2, 1] : vector<8x16x4xf32> -> vector<8x4x16xf32>
    %c0_22 = arith.constant 0 : index
    %c0_23 = arith.constant 0 : index
    %39 = vector.load %arg4[%c0_22, %c0_23] : memref<8x16xf32, #tpu.memory_space<vmem>>, vector<8x16xf32>
    %cst_24 = arith.constant 5.000000e-01 : f32
    %40 = vector.broadcast %cst_24 : f32 to vector<8x16xf32>
    %41 = arith.cmpf ogt, %39, %40 : vector<8x16xf32>
    %42 = vector.shape_cast %41 : vector<8x16xi1> to vector<8x1x16xi1>
    %cst_25 = arith.constant -1.000000e+30 : f32
    %43 = vector.shape_cast %42 : vector<8x1x16xi1> to vector<8x1x16xi1>
    %44 = vector.broadcast %43 : vector<8x1x16xi1> to vector<8x4x16xi1>
    %45 = vector.broadcast %cst_25 : f32 to vector<8x4x16xf32>
    %46 = arith.select %44, %38, %45 : vector<8x4x16xi1>, vector<8x4x16xf32>
    %cst_26 = arith.constant dense<0xFF800000> : vector<8x4xf32>
    %47 = vector.multi_reduction <maximumf>, %46, %cst_26 [2] : vector<8x4x16xf32> to vector<8x4xf32>
    %48 = vector.shape_cast %47 : vector<8x4xf32> to vector<8x4x1xf32>
    %49 = vector.broadcast %48 : vector<8x4x1xf32> to vector<8x4x16xf32>
    %50 = arith.subf %46, %49 : vector<8x4x16xf32>
    %51 = math.exp %50 : vector<8x4x16xf32>
    %cst_27 = arith.constant dense<0.000000e+00> : vector<8x4xf32>
    %52 = vector.multi_reduction <add>, %51, %cst_27 [2] : vector<8x4x16xf32> to vector<8x4xf32>
    %53 = vector.shape_cast %52 : vector<8x4xf32> to vector<8x4x1xf32>
    %54 = tpu.reciprocal %53 {approx = true} : vector<8x4x1xf32> -> vector<8x4x1xf32>
    %55 = vector.broadcast %54 : vector<8x4x1xf32> to vector<8x4x16xf32>
    %56 = arith.mulf %51, %55 : vector<8x4x16xf32>
    %57 = vector.extract_strided_slice %56 {offsets = [0, 0, 0], sizes = [8, 1, 16], strides = [1, 1, 1]} : vector<8x4x16xf32> to vector<8x1x16xf32>
    %58 = vector.shape_cast %57 : vector<8x1x16xf32> to vector<8x16xf32>
    %59 = vector.extract_strided_slice %9 {offsets = [0, 0], sizes = [16, 8], strides = [1, 1]} : vector<16x32xf32> to vector<16x8xf32>
    %cst_28 = arith.constant dense<0.000000e+00> : vector<8x8xf32>
    %60 = tpu.matmul %58, %59, %cst_28 {dimension_numbers = #tpu.dot_dimension_numbers<[1], [0], [0], [1], [0, 0, 1, 1], [], []>} : vector<8x16xf32>, vector<16x8xf32>, vector<8x8xf32> -> vector<8x8xf32>
    %61 = vector.extract_strided_slice %56 {offsets = [0, 1, 0], sizes = [8, 1, 16], strides = [1, 1, 1]} : vector<8x4x16xf32> to vector<8x1x16xf32>
    %62 = vector.shape_cast %61 : vector<8x1x16xf32> to vector<8x16xf32>
    %63 = vector.extract_strided_slice %9 {offsets = [0, 8], sizes = [16, 8], strides = [1, 1]} : vector<16x32xf32> to vector<16x8xf32>
    %cst_29 = arith.constant dense<0.000000e+00> : vector<8x8xf32>
    %64 = tpu.matmul %62, %63, %cst_29 {dimension_numbers = #tpu.dot_dimension_numbers<[1], [0], [0], [1], [0, 0, 1, 1], [], []>} : vector<8x16xf32>, vector<16x8xf32>, vector<8x8xf32> -> vector<8x8xf32>
    %65 = vector.extract_strided_slice %56 {offsets = [0, 2, 0], sizes = [8, 1, 16], strides = [1, 1, 1]} : vector<8x4x16xf32> to vector<8x1x16xf32>
    %66 = vector.shape_cast %65 : vector<8x1x16xf32> to vector<8x16xf32>
    %67 = vector.extract_strided_slice %9 {offsets = [0, 16], sizes = [16, 8], strides = [1, 1]} : vector<16x32xf32> to vector<16x8xf32>
    %cst_30 = arith.constant dense<0.000000e+00> : vector<8x8xf32>
    %68 = tpu.matmul %66, %67, %cst_30 {dimension_numbers = #tpu.dot_dimension_numbers<[1], [0], [0], [1], [0, 0, 1, 1], [], []>} : vector<8x16xf32>, vector<16x8xf32>, vector<8x8xf32> -> vector<8x8xf32>
    %69 = vector.extract_strided_slice %56 {offsets = [0, 3, 0], sizes = [8, 1, 16], strides = [1, 1, 1]} : vector<8x4x16xf32> to vector<8x1x16xf32>
    %70 = vector.shape_cast %69 : vector<8x1x16xf32> to vector<8x16xf32>
    %71 = vector.extract_strided_slice %9 {offsets = [0, 24], sizes = [16, 8], strides = [1, 1]} : vector<16x32xf32> to vector<16x8xf32>
    %cst_31 = arith.constant dense<0.000000e+00> : vector<8x8xf32>
    %72 = tpu.matmul %70, %71, %cst_31 {dimension_numbers = #tpu.dot_dimension_numbers<[1], [0], [0], [1], [0, 0, 1, 1], [], []>} : vector<8x16xf32>, vector<16x8xf32>, vector<8x8xf32> -> vector<8x8xf32>
    %73 = tpu.concatenate %60, %64, %68, %72 in 1 : vector<8x8xf32>, vector<8x8xf32>, vector<8x8xf32>, vector<8x8xf32> -> vector<8x32xf32>
    %c0_32 = arith.constant 0 : index
    %c0_33 = arith.constant 0 : index
    %74 = vector.load %arg9[%c0_32, %c0_33] : memref<32x32xf32, #tpu.memory_space<vmem>>, vector<32x32xf32>
    %cst_34 = arith.constant dense<0.000000e+00> : vector<8x32xf32>
    %75 = tpu.matmul %73, %74, %cst_34 {dimension_numbers = #tpu.dot_dimension_numbers<[1], [0], [0], [1], [0, 0, 1, 1], [], []>} : vector<8x32xf32>, vector<32x32xf32>, vector<8x32xf32> -> vector<8x32xf32>
    %c0_35 = arith.constant 0 : index
    %c0_36 = arith.constant 0 : index
    %76 = vector.load %arg10[%c0_35, %c0_36] : memref<1x32xf32, #tpu.memory_space<vmem>>, vector<1x32xf32>
    %77 = vector.broadcast %76 : vector<1x32xf32> to vector<8x32xf32>
    %78 = arith.addf %75, %77 : vector<8x32xf32>
    %c0_37 = arith.constant 0 : index
    %c0_38 = arith.constant 0 : index
    %79 = vector.load %arg13[%c0_37, %c0_38] : memref<8x32xf32, #tpu.memory_space<vmem>>, vector<8x32xf32>
    tpu.vector_store %arg13[%c0_37, %c0_38], %78 {strides = array<i32>} : memref<8x32xf32, #tpu.memory_space<vmem>>, vector<8x32xf32>,
    return
  }
  func.func @transform_0(%arg0: i32) -> (i32, i32) {
    %c0_i32 = arith.constant 0 : i32
    %c0_i32_0 = arith.constant 0 : i32
    return %arg0, %c0_i32 : i32, i32
  }
  func.func @transform_1(%arg0: i32) -> (i32, i32) {
    %c0_i32 = arith.constant 0 : i32
    %c0_i32_0 = arith.constant 0 : i32
    %c0_i32_1 = arith.constant 0 : i32
    return %c0_i32, %c0_i32_0 : i32, i32
  }
  func.func @transform_2(%arg0: i32) -> (i32, i32) {
    %c0_i32 = arith.constant 0 : i32
    %c0_i32_0 = arith.constant 0 : i32
    return %arg0, %c0_i32 : i32, i32
  }
  func.func @transform_3(%arg0: i32) -> (i32, i32) {
    %c0_i32 = arith.constant 0 : i32
    %c0_i32_0 = arith.constant 0 : i32
    return %arg0, %c0_i32 : i32, i32
  }
  func.func @transform_4(%arg0: i32) -> (i32, i32) {
    %c0_i32 = arith.constant 0 : i32
    %c0_i32_0 = arith.constant 0 : i32
    %c0_i32_1 = arith.constant 0 : i32
    return %c0_i32, %c0_i32_0 : i32, i32
  }
  func.func @transform_5(%arg0: i32) -> (i32, i32) {
    %c0_i32 = arith.constant 0 : i32
    %c0_i32_0 = arith.constant 0 : i32
    %c0_i32_1 = arith.constant 0 : i32
    return %c0_i32, %c0_i32_0 : i32, i32
  }
  func.func @transform_6(%arg0: i32) -> (i32, i32) {
    %c0_i32 = arith.constant 0 : i32
    %c0_i32_0 = arith.constant 0 : i32
    %c0_i32_1 = arith.constant 0 : i32
    return %c0_i32, %c0_i32_0 : i32, i32
  }
  func.func @transform_7(%arg0: i32) -> (i32, i32) {
    %c0_i32 = arith.constant 0 : i32
    %c0_i32_0 = arith.constant 0 : i32
    %c0_i32_1 = arith.constant 0 : i32
    return %c0_i32, %c0_i32_0 : i32, i32
  }
  func.func @transform_8(%arg0: i32) -> (i32, i32) {
    %c0_i32 = arith.constant 0 : i32
    %c0_i32_0 = arith.constant 0 : i32
    %c0_i32_1 = arith.constant 0 : i32
    return %c0_i32, %c0_i32_0 : i32, i32
  }
  func.func @transform_9(%arg0: i32) -> (i32, i32) {
    %c0_i32 = arith.constant 0 : i32
    %c0_i32_0 = arith.constant 0 : i32
    %c0_i32_1 = arith.constant 0 : i32
    return %c0_i32, %c0_i32_0 : i32, i32
  }
  func.func @transform_10(%arg0: i32) -> (i32, i32) {
    %c0_i32 = arith.constant 0 : i32
    %c0_i32_0 = arith.constant 0 : i32
    %c0_i32_1 = arith.constant 0 : i32
    return %c0_i32, %c0_i32_0 : i32, i32
  }
  func.func @transform_11(%arg0: i32) -> (i32, i32) {
    %c0_i32 = arith.constant 0 : i32
    %c0_i32_0 = arith.constant 0 : i32
    %c0_i32_1 = arith.constant 0 : i32
    return %c0_i32, %c0_i32_0 : i32, i32
  }
  func.func @transform_12(%arg0: i32) -> (i32, i32) {
    %c0_i32 = arith.constant 0 : i32
    %c0_i32_0 = arith.constant 0 : i32
    return %arg0, %c0_i32 : i32, i32
  }
  func.func @transform_13(%arg0: i32) -> (i32, i32) {
    %c0_i32 = arith.constant 0 : i32
    %c0_i32_0 = arith.constant 0 : i32
    return %arg0, %c0_i32 : i32, i32
  }
}

</mosaic_0001>

<llo_original>
// kernel: tpu_custom_call.1
$region0: #{tpu_custom_call.1}
  #allocation0 [shape = 'u32[]', space=smem, size = 0x4, offset = 0x4, fixed_abs, tag = 'smem constant byte address 0x4 - core index']
  #allocation1 [shape = 'u32[144,128]{1,0:T(1,128)}', space=vmem, size = 0x12000, scoped, tag = 'internal scratch']
  %s0 = inlined_call_operand.vmem [shape: f32[16,32], index: 0, kind: input, shape index: {}]
  %s1 = inlined_call_operand.vmem [shape: f32[16,32], index: 1, kind: input, shape index: {}]
  %s2 = inlined_call_operand.vmem [shape: f32[256,32], index: 2, kind: input, shape index: {}]
  %s3 = inlined_call_operand.vmem [shape: f32[16,16], index: 3, kind: input, shape index: {}]
  %s4 = inlined_call_operand.vmem [shape: f32[32,96], index: 4, kind: input, shape index: {}]
  %s5 = inlined_call_operand.vmem [shape: f32[1,96], index: 5, kind: input, shape index: {}]
  %s6 = inlined_call_operand.vmem [shape: f32[32,32], index: 6, kind: input, shape index: {}]
  %s7 = inlined_call_operand.vmem [shape: f32[1,32], index: 7, kind: input, shape index: {}]
  %s8 = inlined_call_operand.vmem [shape: f32[32,32], index: 8, kind: input, shape index: {}]
  %s9 = inlined_call_operand.vmem [shape: f32[1,32], index: 9, kind: input, shape index: {}]
  %s10 = inlined_call_operand.vmem [shape: f32[32,128], index: 10, kind: input, shape index: {}]
  %s11 = inlined_call_operand.vmem [shape: f32[1,128], index: 11, kind: input, shape index: {}]
  %s12 = inlined_call_operand.hbm [shape: f32[16,32], index: 12, kind: output, shape index: {0}]
  %s13 = inlined_call_operand.hbm [shape: f32[256,128], index: 13, kind: output, shape index: {1}]
  %14 = xla_tuple %s12, %s13
  %s15 = sld [smem:[#allocation0]]
  $region89: #{tpu_custom_call.1} parent=0
    _
  %s17 = ssub.s32 1, %s15
  %s18 = scalar_select 0, %s17, %s15
  $region1: #{tpu_custom_call.1} parent=0
    #allocation2 [shape = 'u8[8192]{0}', space=vmem, size = 0x2000, scoped, tag = 'output window, operand 0']
    #allocation3 [shape = 's32[2]{0}', space=sflag, size = 0x8, scoped, tag = 'scoped memory for tpu_custom_call.1']
    #allocation4 [shape = 'u8[131072]{0}', space=vmem, size = 0x20000, scoped, tag = 'output window, operand 1']
    #allocation5 [shape = 's32[2]{0}', space=sflag, size = 0x8, scoped, tag = 'scoped memory for tpu_custom_call.1']
    %19 = vsyncpa [#allocation3], 0
    %s20 = scalar_lea.sflag [#allocation3], 1
    %21 = vsyncpa %s20, 0
    %22 = vsyncpa [#allocation5], 0
    %s23 = scalar_lea.sflag [#allocation5], 1
    %24 = vsyncpa %s23, 0
    loop: start=0, step=1, limit=4
    $region2: #{tpu_custom_call.1} parent=1 // loop_pre_header
      _
    $region3: #{tpu_custom_call.1} parent=1 // loop_header
      %s26 = sphi 0, %s30
      %p27 = scmp.ge.s32.totalorder %s26, 4
      %s36 = sphi 0, %s38
      %s39 = sphi 0, %s36
      %s40 = sphi 0, %s39
      %s56 = sphi 0, %s40
      %s60 = sphi 0, %s60
      %s62 = sphi 0, %s60
      %s63 = sphi 0, %s62
      %s77 = sphi 0, %s63
      %s83 = sphi 0, %s85
      %s86 = sphi 0, %s83
      %s87 = sphi 0, %s86
      %s103 = sphi 0, %s87
      %s109 = sphi 0, %s111
      %s112 = sphi 0, %s109
      %s113 = sphi 0, %s112
      %s129 = sphi 0, %s113
      %s133 = sphi 0, %s133
      %s135 = sphi 0, %s133
      %s136 = sphi 0, %s135
      %s150 = sphi 0, %s136
      %s154 = sphi 0, %s154
      %s156 = sphi 0, %s154
      %s157 = sphi 0, %s156
      %s171 = sphi 0, %s157
      %s175 = sphi 0, %s175
      %s177 = sphi 0, %s175
      %s178 = sphi 0, %s177
      %s192 = sphi 0, %s178
      %s196 = sphi 0, %s196
      %s198 = sphi 0, %s196
      %s199 = sphi 0, %s198
      %s213 = sphi 0, %s199
      %s217 = sphi 0, %s217
      %s219 = sphi 0, %s217
      %s220 = sphi 0, %s219
      %s234 = sphi 0, %s220
      %s238 = sphi 0, %s238
      %s240 = sphi 0, %s238
      %s241 = sphi 0, %s240
      %s255 = sphi 0, %s241
      %s259 = sphi 0, %s259
      %s261 = sphi 0, %s259
      %s262 = sphi 0, %s261
      %s276 = sphi 0, %s262
      %s280 = sphi 0, %s280
      %s282 = sphi 0, %s280
      %s283 = sphi 0, %s282
      %s297 = sphi 0, %s283
      %s303 = sphi 0, %s305
      %s306 = sphi 0, %s303
      %s307 = sphi 0, %s306
      %s323 = sphi 0, %s307
      %s329 = sphi 0, %s331
      %s332 = sphi 0, %s329
      %s333 = sphi 0, %s332
      %s349 = sphi 0, %s333
    $region4: #{tpu_custom_call.1} parent=1 // loop_header_branch
      %29 = sbr.rel (%p27) target = $region8
    $region5: #{tpu_custom_call.1} parent=1 // loop_body
      %s31 = ssub.s32 %s26, 1
      %s32 = ssub.s32 %s26, 2
      %s33 = sadd.s32 %s26, 1
      %s34 = ssub.s32 %s26, %s33
      %p35 = scmp.eq.s32.totalorder %s34, 0
      %s37 = sadd.s32 %s36, 1
      %s38 = scalar_select %p35, %s36, %s37
      %p41 = pneg %p35
      %p42 = scmp.eq.s32.totalorder %s26, 1
      %p43 = por %p41, %p42
      %p44 = scmp.ne.s32.totalorder %s36, %s39
      %p45 = scmp.eq.s32.totalorder %s26, 0
      %p46 = por %p44, %p45
      %p47 = scmp.ne.s32.totalorder %s36, %s39
      %p48 = scmp.eq.s32.totalorder %s31, 1
      %p49 = por %p47, %p48
      %p50 = scmp.ne.s32.totalorder %s39, %s40
      %p51 = scmp.eq.s32.totalorder %s31, 0
      %p52 = por %p50, %p51
      %p53 = scmp.ne.s32.totalorder %s39, %s40
      %p54 = scmp.eq.s32.totalorder %s32, 1
      %p55 = por %p53, %p54
      %p57 = scmp.ne.s32.totalorder %s40, %s56
      %p58 = scmp.eq.s32.totalorder %s32, 0
      %p59 = por %p57, %p58
      %s61 = sadd.s32 %s60, 1
      %p64 = scmp.eq.s32.totalorder %s26, 1
      %p65 = scmp.ne.s32.totalorder %s60, %s62
      %p66 = scmp.eq.s32.totalorder %s26, 0
      %p67 = por %p65, %p66
      %p68 = scmp.ne.s32.totalorder %s60, %s62
      %p69 = scmp.eq.s32.totalorder %s31, 1
      %p70 = por %p68, %p69
      %p71 = scmp.ne.s32.totalorder %s62, %s63
      %p72 = scmp.eq.s32.totalorder %s31, 0
      %p73 = por %p71, %p72
      %p74 = scmp.ne.s32.totalorder %s62, %s63
      %p75 = scmp.eq.s32.totalorder %s32, 1
      %p76 = por %p74, %p75
      %p78 = scmp.ne.s32.totalorder %s63, %s77
      %p79 = scmp.eq.s32.totalorder %s32, 0
      %p80 = por %p78, %p79
      %s81 = ssub.s32 %s26, %s33
      %p82 = scmp.eq.s32.totalorder %s81, 0
      %s84 = sadd.s32 %s83, 1
      %s85 = scalar_select %p82, %s83, %s84
      %p88 = pneg %p82
      %p89 = scmp.eq.s32.totalorder %s26, 1
      %p90 = por %p88, %p89
      %p91 = scmp.ne.s32.totalorder %s83, %s86
      %p92 = scmp.eq.s32.totalorder %s26, 0
      %p93 = por %p91, %p92
      %p94 = scmp.ne.s32.totalorder %s83, %s86
      %p95 = scmp.eq.s32.totalorder %s31, 1
      %p96 = por %p94, %p95
      %p97 = scmp.ne.s32.totalorder %s86, %s87
      %p98 = scmp.eq.s32.totalorder %s31, 0
      %p99 = por %p97, %p98
      %p100 = scmp.ne.s32.totalorder %s86, %s87
      %p101 = scmp.eq.s32.totalorder %s32, 1
      %p102 = por %p100, %p101
      %p104 = scmp.ne.s32.totalorder %s87, %s103
      %p105 = scmp.eq.s32.totalorder %s32, 0
      %p106 = por %p104, %p105
      %s107 = ssub.s32 %s26, %s33
      %p108 = scmp.eq.s32.totalorder %s107, 0
      %s110 = sadd.s32 %s109, 1
      %s111 = scalar_select %p108, %s109, %s110
      %p114 = pneg %p108
      %p115 = scmp.eq.s32.totalorder %s26, 1
      %p116 = por %p114, %p115
      %p117 = scmp.ne.s32.totalorder %s109, %s112
      %p118 = scmp.eq.s32.totalorder %s26, 0
      %p119 = por %p117, %p118
      %p120 = scmp.ne.s32.totalorder %s109, %s112
      %p121 = scmp.eq.s32.totalorder %s31, 1
      %p122 = por %p120, %p121
      %p123 = scmp.ne.s32.totalorder %s112, %s113
      %p124 = scmp.eq.s32.totalorder %s31, 0
      %p125 = por %p123, %p124
      %p126 = scmp.ne.s32.totalorder %s112, %s113
      %p127 = scmp.eq.s32.totalorder %s32, 1
      %p128 = por %p126, %p127
      %p130 = scmp.ne.s32.totalorder %s113, %s129
      %p131 = scmp.eq.s32.totalorder %s32, 0
      %p132 = por %p130, %p131
      %s134 = sadd.s32 %s133, 1
      %p137 = scmp.eq.s32.totalorder %s26, 1
      %p138 = scmp.ne.s32.totalorder %s133, %s135
      %p139 = scmp.eq.s32.totalorder %s26, 0
      %p140 = por %p138, %p139
      %p141 = scmp.ne.s32.totalorder %s133, %s135
      %p142 = scmp.eq.s32.totalorder %s31, 1
      %p143 = por %p141, %p142
      %p144 = scmp.ne.s32.totalorder %s135, %s136
      %p145 = scmp.eq.s32.totalorder %s31, 0
      %p146 = por %p144, %p145
      %p147 = scmp.ne.s32.totalorder %s135, %s136
      %p148 = scmp.eq.s32.totalorder %s32, 1
      %p149 = por %p147, %p148
      %p151 = scmp.ne.s32.totalorder %s136, %s150
      %p152 = scmp.eq.s32.totalorder %s32, 0
      %p153 = por %p151, %p152
      %s155 = sadd.s32 %s154, 1
      %p158 = scmp.eq.s32.totalorder %s26, 1
      %p159 = scmp.ne.s32.totalorder %s154, %s156
      %p160 = scmp.eq.s32.totalorder %s26, 0
      %p161 = por %p159, %p160
      %p162 = scmp.ne.s32.totalorder %s154, %s156
      %p163 = scmp.eq.s32.totalorder %s31, 1
      %p164 = por %p162, %p163
      %p165 = scmp.ne.s32.totalorder %s156, %s157
      %p166 = scmp.eq.s32.totalorder %s31, 0
      %p167 = por %p165, %p166
      %p168 = scmp.ne.s32.totalorder %s156, %s157
      %p169 = scmp.eq.s32.totalorder %s32, 1
      %p170 = por %p168, %p169
      %p172 = scmp.ne.s32.totalorder %s157, %s171
      %p173 = scmp.eq.s32.totalorder %s32, 0
      %p174 = por %p172, %p173
      %s176 = sadd.s32 %s175, 1
      %p179 = scmp.eq.s32.totalorder %s26, 1
      %p180 = scmp.ne.s32.totalorder %s175, %s177
      %p181 = scmp.eq.s32.totalorder %s26, 0
      %p182 = por %p180, %p181
      %p183 = scmp.ne.s32.totalorder %s175, %s177
      %p184 = scmp.eq.s32.totalorder %s31, 1
      %p185 = por %p183, %p184
      %p186 = scmp.ne.s32.totalorder %s177, %s178
      %p187 = scmp.eq.s32.totalorder %s31, 0
      %p188 = por %p186, %p187
      %p189 = scmp.ne.s32.totalorder %s177, %s178
      %p190 = scmp.eq.s32.totalorder %s32, 1
      %p191 = por %p189, %p190
      %p193 = scmp.ne.s32.totalorder %s178, %s192
      %p194 = scmp.eq.s32.totalorder %s32, 0
      %p195 = por %p193, %p194
      %s197 = sadd.s32 %s196, 1
      %p200 = scmp.eq.s32.totalorder %s26, 1
      %p201 = scmp.ne.s32.totalorder %s196, %s198
      %p202 = scmp.eq.s32.totalorder %s26, 0
      %p203 = por %p201, %p202
      %p204 = scmp.ne.s32.totalorder %s196, %s198
      %p205 = scmp.eq.s32.totalorder %s31, 1
      %p206 = por %p204, %p205
      %p207 = scmp.ne.s32.totalorder %s198, %s199
      %p208 = scmp.eq.s32.totalorder %s31, 0
      %p209 = por %p207, %p208
      %p210 = scmp.ne.s32.totalorder %s198, %s199
      %p211 = scmp.eq.s32.totalorder %s32, 1
      %p212 = por %p210, %p211
      %p214 = scmp.ne.s32.totalorder %s199, %s213
      %p215 = scmp.eq.s32.totalorder %s32, 0
      %p216 = por %p214, %p215
      %s218 = sadd.s32 %s217, 1
      %p221 = scmp.eq.s32.totalorder %s26, 1
      %p222 = scmp.ne.s32.totalorder %s217, %s219
      %p223 = scmp.eq.s32.totalorder %s26, 0
      %p224 = por %p222, %p223
      %p225 = scmp.ne.s32.totalorder %s217, %s219
      %p226 = scmp.eq.s32.totalorder %s31, 1
      %p227 = por %p225, %p226
      %p228 = scmp.ne.s32.totalorder %s219, %s220
      %p229 = scmp.eq.s32.totalorder %s31, 0
      %p230 = por %p228, %p229
      %p231 = scmp.ne.s32.totalorder %s219, %s220
      %p232 = scmp.eq.s32.totalorder %s32, 1
      %p233 = por %p231, %p232
      %p235 = scmp.ne.s32.totalorder %s220, %s234
      %p236 = scmp.eq.s32.totalorder %s32, 0
      %p237 = por %p235, %p236
      %s239 = sadd.s32 %s238, 1
      %p242 = scmp.eq.s32.totalorder %s26, 1
      %p243 = scmp.ne.s32.totalorder %s238, %s240
      %p244 = scmp.eq.s32.totalorder %s26, 0
      %p245 = por %p243, %p244
      %p246 = scmp.ne.s32.totalorder %s238, %s240
      %p247 = scmp.eq.s32.totalorder %s31, 1
      %p248 = por %p246, %p247
      %p249 = scmp.ne.s32.totalorder %s240, %s241
      %p250 = scmp.eq.s32.totalorder %s31, 0
      %p251 = por %p249, %p250
      %p252 = scmp.ne.s32.totalorder %s240, %s241
      %p253 = scmp.eq.s32.totalorder %s32, 1
      %p254 = por %p252, %p253
      %p256 = scmp.ne.s32.totalorder %s241, %s255
      %p257 = scmp.eq.s32.totalorder %s32, 0
      %p258 = por %p256, %p257
      %s260 = sadd.s32 %s259, 1
      %p263 = scmp.eq.s32.totalorder %s26, 1
      %p264 = scmp.ne.s32.totalorder %s259, %s261
      %p265 = scmp.eq.s32.totalorder %s26, 0
      %p266 = por %p264, %p265
      %p267 = scmp.ne.s32.totalorder %s259, %s261
      %p268 = scmp.eq.s32.totalorder %s31, 1
      %p269 = por %p267, %p268
      %p270 = scmp.ne.s32.totalorder %s261, %s262
      %p271 = scmp.eq.s32.totalorder %s31, 0
      %p272 = por %p270, %p271
      %p273 = scmp.ne.s32.totalorder %s261, %s262
      %p274 = scmp.eq.s32.totalorder %s32, 1
      %p275 = por %p273, %p274
      %p277 = scmp.ne.s32.totalorder %s262, %s276
      %p278 = scmp.eq.s32.totalorder %s32, 0
      %p279 = por %p277, %p278
      %s281 = sadd.s32 %s280, 1
      %p284 = scmp.eq.s32.totalorder %s26, 1
      %p285 = scmp.ne.s32.totalorder %s280, %s282
      %p286 = scmp.eq.s32.totalorder %s26, 0
      %p287 = por %p285, %p286
      %p288 = scmp.ne.s32.totalorder %s280, %s282
      %p289 = scmp.eq.s32.totalorder %s31, 1
      %p290 = por %p288, %p289
      %p291 = scmp.ne.s32.totalorder %s282, %s283
      %p292 = scmp.eq.s32.totalorder %s31, 0
      %p293 = por %p291, %p292
      %p294 = scmp.ne.s32.totalorder %s282, %s283
      %p295 = scmp.eq.s32.totalorder %s32, 1
      %p296 = por %p294, %p295
      %p298 = scmp.ne.s32.totalorder %s283, %s297
      %p299 = scmp.eq.s32.totalorder %s32, 0
      %p300 = por %p298, %p299
      %s301 = ssub.s32 %s26, %s33
      %p302 = scmp.eq.s32.totalorder %s301, 0
      %s304 = sadd.s32 %s303, 1
      %s305 = scalar_select %p302, %s303, %s304
      %p308 = pneg %p302
      %p309 = scmp.eq.s32.totalorder %s26, 1
      %p310 = por %p308, %p309
      %p311 = scmp.ne.s32.totalorder %s303, %s306
      %p312 = scmp.eq.s32.totalorder %s26, 0
      %p313 = por %p311, %p312
      %p314 = scmp.ne.s32.totalorder %s303, %s306
      %p315 = scmp.eq.s32.totalorder %s31, 1
      %p316 = por %p314, %p315
      %p317 = scmp.ne.s32.totalorder %s306, %s307
      %p318 = scmp.eq.s32.totalorder %s31, 0
      %p319 = por %p317, %p318
      %p320 = scmp.ne.s32.totalorder %s306, %s307
      %p321 = scmp.eq.s32.totalorder %s32, 1
      %p322 = por %p320, %p321
      %p324 = scmp.ne.s32.totalorder %s307, %s323
      %p325 = scmp.eq.s32.totalorder %s32, 0
      %p326 = por %p324, %p325
      %s327 = ssub.s32 %s26, %s33
      %p328 = scmp.eq.s32.totalorder %s327, 0
      %s330 = sadd.s32 %s329, 1
      %s331 = scalar_select %p328, %s329, %s330
      %p334 = pneg %p328
      %p335 = scmp.eq.s32.totalorder %s26, 1
      %p336 = por %p334, %p335
      %p337 = scmp.ne.s32.totalorder %s329, %s332
      %p338 = scmp.eq.s32.totalorder %s26, 0
      %p339 = por %p337, %p338
      %p340 = scmp.ne.s32.totalorder %s329, %s332
      %p341 = scmp.eq.s32.totalorder %s31, 1
      %p342 = por %p340, %p341
      %p343 = scmp.ne.s32.totalorder %s332, %s333
      %p344 = scmp.eq.s32.totalorder %s31, 0
      %p345 = por %p343, %p344
      %p346 = scmp.ne.s32.totalorder %s332, %s333
      %p347 = scmp.eq.s32.totalorder %s32, 1
      %p348 = por %p346, %p347
      %p350 = scmp.ne.s32.totalorder %s333, %s349
      %p351 = scmp.eq.s32.totalorder %s32, 0
      %p352 = por %p350, %p351
      %p353 = scmp.le.s32.totalorder 1, %s26
      %p354 = scmp.lt.s32.totalorder %s26, 3
      %p355 = pnand %p353, %p354
      %p356 = pneg %p355
      // Predicated region
      $region9: #{tpu_custom_call.1} parent=5 // pred_check
        _
      $region10: #{tpu_custom_call.1} parent=5 // pred_check_branch
        %358 = sbr.rel (%p355) target = $region12
      $region11: #{tpu_custom_call.1} parent=5 // pred_region
        %s359 = ssub.s32 %s26, 1
        // Predicated region
        $region13: #{tpu_custom_call.1} parent=11 // pred_check
          %p360 = pneg %p73
        $region14: #{tpu_custom_call.1} parent=11 // pred_check_branch
          %362 = sbr.rel (%p360) target = $region16
        $region15: #{tpu_custom_call.1} parent=11 // pred_region
          _
        $region16: #{tpu_custom_call.1} parent=11 // pred_fallthru
          _
        // Predicated region
        $region17: #{tpu_custom_call.1} parent=11 // pred_check
          %p363 = pneg %p146
        $region18: #{tpu_custom_call.1} parent=11 // pred_check_branch
          %365 = sbr.rel (%p363) target = $region20
        $region19: #{tpu_custom_call.1} parent=11 // pred_region
          _
        $region20: #{tpu_custom_call.1} parent=11 // pred_fallthru
          _
        // Predicated region
        $region21: #{tpu_custom_call.1} parent=11 // pred_check
          %p366 = pneg %p167
        $region22: #{tpu_custom_call.1} parent=11 // pred_check_branch
          %368 = sbr.rel (%p366) target = $region24
        $region23: #{tpu_custom_call.1} parent=11 // pred_region
          _
        $region24: #{tpu_custom_call.1} parent=11 // pred_fallthru
          _
        // Predicated region
        $region25: #{tpu_custom_call.1} parent=11 // pred_check
          %p369 = pneg %p188
        $region26: #{tpu_custom_call.1} parent=11 // pred_check_branch
          %371 = sbr.rel (%p369) target = $region28
        $region27: #{tpu_custom_call.1} parent=11 // pred_region
          _
        $region28: #{tpu_custom_call.1} parent=11 // pred_fallthru
          _
        // Predicated region
        $region29: #{tpu_custom_call.1} parent=11 // pred_check
          %p372 = pneg %p209
        $region30: #{tpu_custom_call.1} parent=11 // pred_check_branch
          %374 = sbr.rel (%p372) target = $region32
        $region31: #{tpu_custom_call.1} parent=11 // pred_region
          _
        $region32: #{tpu_custom_call.1} parent=11 // pred_fallthru
          _
        // Predicated region
        $region33: #{tpu_custom_call.1} parent=11 // pred_check
          %p375 = pneg %p230
        $region34: #{tpu_custom_call.1} parent=11 // pred_check_branch
          %377 = sbr.rel (%p375) target = $region36
        $region35: #{tpu_custom_call.1} parent=11 // pred_region
          _
        $region36: #{tpu_custom_call.1} parent=11 // pred_fallthru
          _
        // Predicated region
        $region37: #{tpu_custom_call.1} parent=11 // pred_check
          %p378 = pneg %p251
        $region38: #{tpu_custom_call.1} parent=11 // pred_check_branch
          %380 = sbr.rel (%p378) target = $region40
        $region39: #{tpu_custom_call.1} parent=11 // pred_region
          _
        $region40: #{tpu_custom_call.1} parent=11 // pred_fallthru
          _
        // Predicated region
        $region41: #{tpu_custom_call.1} parent=11 // pred_check
          %p381 = pneg %p272
        $region42: #{tpu_custom_call.1} parent=11 // pred_check_branch
          %383 = sbr.rel (%p381) target = $region44
        $region43: #{tpu_custom_call.1} parent=11 // pred_region
          _
        $region44: #{tpu_custom_call.1} parent=11 // pred_fallthru
          _
        // Predicated region
        $region45: #{tpu_custom_call.1} parent=11 // pred_check
          %p384 = pneg %p293
        $region46: #{tpu_custom_call.1} parent=11 // pred_check_branch
          %386 = sbr.rel (%p384) target = $region48
        $region47: #{tpu_custom_call.1} parent=11 // pred_region
          _
        $region48: #{tpu_custom_call.1} parent=11 // pred_fallthru
          _
      $region12: #{tpu_custom_call.1} parent=5 // pred_fallthru
        _
      %p387 = scmp.lt.s32.totalorder %s26, 2
      // Predicated region
      $region49: #{tpu_custom_call.1} parent=5 // pred_check
        %p388 = pneg %p387
      $region50: #{tpu_custom_call.1} parent=5 // pred_check_branch
        %390 = sbr.rel (%p388) target = $region52
      $region51: #{tpu_custom_call.1} parent=5 // pred_region
        // Predicated region
        $region53: #{tpu_custom_call.1} parent=51 // pred_check
          %p391 = pneg %p46
        $region54: #{tpu_custom_call.1} parent=51 // pred_check_branch
          %393 = sbr.rel (%p391) target = $region56
        $region55: #{tpu_custom_call.1} parent=51 // pred_region
          %p394 = scmp.lt.s32.totalorder %s26, 1
          %s395 = scalar_select %p394, %s26, 1
          %s396 = smul.addr %s395, 8
          %s397 = scalar_lea.vmem %s0, %s396
        $region56: #{tpu_custom_call.1} parent=51 // pred_fallthru
          _
        // Predicated region
        $region57: #{tpu_custom_call.1} parent=51 // pred_check
          %p398 = pneg %p93
        $region58: #{tpu_custom_call.1} parent=51 // pred_check_branch
          %400 = sbr.rel (%p398) target = $region60
        $region59: #{tpu_custom_call.1} parent=51 // pred_region
          %s401 = smul.u32 16, %s26
          %p402 = scmp.lt.s32.totalorder %s401, 31
          %s403 = scalar_select %p402, %s401, 31
          %s404 = smul.addr %s403, 8
          %s405 = scalar_lea.vmem %s2, %s404
          %s406 = smul.u32 16, %s26
        $region60: #{tpu_custom_call.1} parent=51 // pred_fallthru
          _
        // Predicated region
        $region61: #{tpu_custom_call.1} parent=51 // pred_check
          %p407 = pneg %p119
        $region62: #{tpu_custom_call.1} parent=51 // pred_check_branch
          %409 = sbr.rel (%p407) target = $region64
        $region63: #{tpu_custom_call.1} parent=51 // pred_region
          %p410 = scmp.lt.s32.totalorder %s26, 1
          %s411 = scalar_select %p410, %s26, 1
          %s412 = smul.addr %s411, 8
          %s413 = scalar_lea.vmem %s3, %s412
        $region64: #{tpu_custom_call.1} parent=51 // pred_fallthru
          _
      $region52: #{tpu_custom_call.1} parent=5 // pred_fallthru
        _
      %p414 = scmp.le.s32.totalorder 1, %s26
      %p415 = scmp.lt.s32.totalorder %s26, 3
      %p416 = pnand %p414, %p415
      %p417 = pneg %p416
      // Predicated region
      $region65: #{tpu_custom_call.1} parent=5 // pred_check
        _
      $region66: #{tpu_custom_call.1} parent=5 // pred_check_branch
        %419 = sbr.rel (%p416) target = $region68
      $region67: #{tpu_custom_call.1} parent=5 // pred_region
        %s420 = ssub.s32 %s26, 1
        %p421 = scmp.lt.s32.totalorder %s31, 1
        %s422 = scalar_select %p421, %s31, 1
        %s423 = smul.addr %s422, 8
        %s424 = scalar_lea.vmem %s0, %s423
        %p425 = pneg %p52
        %p426 = pneg %p49
        %p427 = pneg %p73
        %p428 = pneg %p70
        %s429 = smul.u32 16, %s31
        %p430 = scmp.lt.s32.totalorder %s429, 31
        %s431 = scalar_select %p430, %s429, 31
        %s432 = smul.addr %s431, 8
        %s433 = scalar_lea.vmem %s2, %s432
        %p434 = pneg %p99
        %p435 = pneg %p96
        %p436 = scmp.lt.s32.totalorder %s31, 1
        %s437 = scalar_select %p436, %s31, 1
        %s438 = smul.addr %s437, 8
        %s439 = scalar_lea.vmem %s3, %s438
        %p440 = pneg %p125
        %p441 = pneg %p122
        %p442 = pneg %p146
        %p443 = pneg %p143
        %p444 = pneg %p167
        %p445 = pneg %p164
        %p446 = pneg %p188
        %p447 = pneg %p185
        %p448 = pneg %p209
        %p449 = pneg %p206
        %p450 = pneg %p230
        %p451 = pneg %p227
        %p452 = pneg %p251
        %p453 = pneg %p248
        %p454 = pneg %p272
        %p455 = pneg %p269
        %p456 = pneg %p293
        %p457 = pneg %p290
        %p458 = pneg %p319
        %p459 = pneg %p316
        %s460 = sand.u32 %s306, 1
        %s461 = scalar_lea.sflag [#allocation3], %s460
        %s462 = sand.u32 %s306, 1
        %s463 = smul.addr %s462, 8
        %s464 = scalar_lea.vmem [#allocation2], %s463
        %p465 = pneg %p345
        %p466 = pneg %p342
        %s467 = sand.u32 %s332, 1
        %s468 = scalar_lea.sflag [#allocation5], %s467
        %s469 = sand.u32 %s332, 1
        %s470 = smul.addr %s469, 128
        %s471 = scalar_lea.vmem [#allocation4], %s470
        %p472 = scmp.lt.s32.totalorder %s31, 1
        %s473 = scalar_select %p472, %s31, 1
        %s474 = smul.addr %s473, 8
        %s475 = scalar_lea.vmem %s0, %s474
        %s476 = smul.u32 16, %s31
        %p477 = scmp.lt.s32.totalorder %s476, 31
        %s478 = scalar_select %p477, %s476, 31
        %s479 = smul.addr %s478, 8
        %s480 = scalar_lea.vmem %s2, %s479
        %s481 = smul.u32 16, %s31
        %p482 = scmp.lt.s32.totalorder %s31, 1
        %s483 = scalar_select %p482, %s31, 1
        %s484 = smul.addr %s483, 8
        %s485 = scalar_lea.vmem %s3, %s484
        %s486 = smul.u32 16, %s31
        %v487 = vld [vmem:[%s4] sm:$0xff]
        %v488 = vld [vmem:[%s4 + $0x8] sm:$0xff]
        %v489 = vld [vmem:[%s4 + $0x10] sm:$0xff]
        %v490 = vld [vmem:[%s4 + $0x18] sm:$0xff]
        %v491 = vld [vmem:[%s5] sm:$0x1]
        %v492 = vld [vmem:[%s1] sm:$0xff]
        %v493 = vld [vmem:[%s1 + $0x8] sm:$0xff]
        %v495 = vlaneseq
        %v496 = vshrl.u32 %v495, 7
        %v497 = vsub.s32 0, %v496
        %v498 = vrot.slane %v491, %v497
        %503 = vrot.lane.b32.xlu0 %v487, 96
        %v504 = vpop.permute.xlu0 %503
        %505 = vrot.lane.b32.xlu0 %v488, 96
        %v506 = vpop.permute.xlu0 %505
        %507 = vrot.lane.b32.xlu0 %v489, 96
        %v508 = vpop.permute.xlu0 %507
        %509 = vrot.lane.b32.xlu0 %v490, 96
        %v510 = vpop.permute.xlu0 %509
        %515 = vrot.lane.b32.xlu0 %v498, 96
        %v516 = vpop.permute.xlu0 %515
        %vm518 = vcmask 261120
        %v520 = vsel %vm518, %v492, 0
        %v523 = vsel %vm518, %v493, 0
        %525 = vmatprep.subr.mxu0 0.0
        %526 = vmatpush1.msra.mxu0 0.0
        %527 = vmatprep.subr.mxu0 0.0
        %528 = vmatpush1.msra.mxu0 0.0
        %529 = vmatprep.subr.mxu0 0.0
        %530 = vmatpush1.msra.mxu0 0.0
        %531 = vmatprep.subr.mxu0 0.0
        %532 = vmatpush1.msra.mxu0 0.0
        %533 = vmatprep.subr.mxu0 0.0
        %534 = vmatpush1.msra.mxu0 0.0
        %535 = vmatprep.subr.mxu0 0.0
        %536 = vmatpush1.msra.mxu0 0.0
        %537 = vmatprep.subr.mxu0 0.0
        %538 = vmatpush1.msra.mxu0 0.0
        %539 = vmatprep.subr.mxu0 0.0
        %540 = vmatpush1.msra.mxu0 0.0
        %541 = vmatprep.subr.mxu0 0.0
        %542 = vmatpush1.msra.mxu0 0.0
        %543 = vmatprep.subr.mxu0 0.0
        %544 = vmatpush1.msra.mxu0 0.0
        %545 = vmatprep.subr.mxu0 0.0
        %546 = vmatpush1.msra.mxu0 0.0
        %547 = vmatprep.subr.mxu0 0.0
        %548 = vmatpush1.msra.mxu0 0.0
        %549 = vmatprep.subr.mxu0 0.0
        %550 = vmatpush1.msra.mxu0 %v510
        %551 = vmatprep.subr.mxu0 0.0
        %552 = vmatpush1.msra.mxu0 %v508
        %553 = vmatprep.subr.mxu0 0.0
        %554 = vmatpush1.msra.mxu0 %v506
        %555 = vmatprep.subr.mxu0 0.0
        %556 = vmatpush1.msra.mxu0 %v504
        %557 = vmatprep.subr.mxu0 0.0
        %558 = vmatpush2.msra.mxu0 0.0
        %559 = vmatprep.subr.mxu0 0.0
        %560 = vmatpush2.msra.mxu0 0.0
        %561 = vmatprep.subr.mxu0 0.0
        %562 = vmatpush2.msra.mxu0 0.0
        %563 = vmatprep.subr.mxu0 0.0
        %564 = vmatpush2.msra.mxu0 0.0
        %565 = vmatprep.subr.mxu0 0.0
        %566 = vmatpush2.msra.mxu0 0.0
        %567 = vmatprep.subr.mxu0 0.0
        %568 = vmatpush2.msra.mxu0 0.0
        %569 = vmatprep.subr.mxu0 0.0
        %570 = vmatpush2.msra.mxu0 0.0
        %571 = vmatprep.subr.mxu0 0.0
        %572 = vmatpush2.msra.mxu0 0.0
        %573 = vmatprep.subr.mxu0 0.0
        %574 = vmatpush2.msra.mxu0 0.0
        %575 = vmatprep.subr.mxu0 0.0
        %576 = vmatpush2.msra.mxu0 0.0
        %577 = vmatprep.subr.mxu0 0.0
        %578 = vmatpush2.msra.mxu0 0.0
        %579 = vmatprep.subr.mxu0 0.0
        %580 = vmatpush2.msra.mxu0 0.0
        %581 = vmatprep.subr.mxu0 0.0
        %582 = vmatpush2.msra.mxu0 0.0
        %583 = vmatprep.subr.mxu0 0.0
        %584 = vmatpush2.msra.mxu0 0.0
        %585 = vmatprep.subr.mxu0 0.0
        %586 = vmatpush2.msra.mxu0 0.0
        %587 = vmatprep.subr.mxu0 0.0
        %588 = vmatpush2.msra.mxu0 0.0
        %589 = vmatprep.mubr.f32.mxu0 0.0
        %590 = vmatmul.mubr.f32.gmra.mxu0 %v520
        %v591 = vpop.f32.mrf.mxu0
        %v592 = vadd.f32 %v516, %v591
        %v593 = vpop.f32.mrf.mxu0
        %594 = vmatprep.mubr.f32.mxu0 0.0
        %595 = vmatmul.mubr.f32.gmra.mxu0 %v523
        %v596 = vpop.f32.mrf.mxu0
        %v597 = vadd.f32 %v516, %v596
        %v598 = vpop.f32.mrf.mxu0
        %599 = vdwg.mxu0
        %v600 = vld [vmem:[%s475] sm:$0xff]
        %v603 = vsel %vm518, %v600, 0
        %605 = vmatprep.subr.mxu0 0.0
        %606 = vmatpush1.msra.mxu0 0.0
        %607 = vmatprep.subr.mxu0 0.0
        %608 = vmatpush1.msra.mxu0 0.0
        %609 = vmatprep.subr.mxu0 0.0
        %610 = vmatpush1.msra.mxu0 0.0
        %611 = vmatprep.subr.mxu0 0.0
        %612 = vmatpush1.msra.mxu0 0.0
        %613 = vmatprep.subr.mxu0 0.0
        %614 = vmatpush1.msra.mxu0 0.0
        %615 = vmatprep.subr.mxu0 0.0
        %616 = vmatpush1.msra.mxu0 0.0
        %617 = vmatprep.subr.mxu0 0.0
        %618 = vmatpush1.msra.mxu0 0.0
        %619 = vmatprep.subr.mxu0 0.0
        %620 = vmatpush1.msra.mxu0 0.0
        %621 = vmatprep.subr.mxu0 0.0
        %622 = vmatpush1.msra.mxu0 0.0
        %623 = vmatprep.subr.mxu0 0.0
        %624 = vmatpush1.msra.mxu0 0.0
        %625 = vmatprep.subr.mxu0 0.0
        %626 = vmatpush1.msra.mxu0 0.0
        %627 = vmatprep.subr.mxu0 0.0
        %628 = vmatpush1.msra.mxu0 0.0
        %629 = vmatprep.subr.mxu0 0.0
        %630 = vmatpush1.msra.mxu0 %v490
        %631 = vmatprep.subr.mxu0 0.0
        %632 = vmatpush1.msra.mxu0 %v489
        %633 = vmatprep.subr.mxu0 0.0
        %634 = vmatpush1.msra.mxu0 %v488
        %635 = vmatprep.subr.mxu0 0.0
        %636 = vmatpush1.msra.mxu0 %v487
        %637 = vmatprep.subr.mxu0 0.0
        %638 = vmatpush2.msra.mxu0 0.0
        %639 = vmatprep.subr.mxu0 0.0
        %640 = vmatpush2.msra.mxu0 0.0
        %641 = vmatprep.subr.mxu0 0.0
        %642 = vmatpush2.msra.mxu0 0.0
        %643 = vmatprep.subr.mxu0 0.0
        %644 = vmatpush2.msra.mxu0 0.0
        %645 = vmatprep.subr.mxu0 0.0
        %646 = vmatpush2.msra.mxu0 0.0
        %647 = vmatprep.subr.mxu0 0.0
        %648 = vmatpush2.msra.mxu0 0.0
        %649 = vmatprep.subr.mxu0 0.0
        %650 = vmatpush2.msra.mxu0 0.0
        %651 = vmatprep.subr.mxu0 0.0
        %652 = vmatpush2.msra.mxu0 0.0
        %653 = vmatprep.subr.mxu0 0.0
        %654 = vmatpush2.msra.mxu0 0.0
        %655 = vmatprep.subr.mxu0 0.0
        %656 = vmatpush2.msra.mxu0 0.0
        %657 = vmatprep.subr.mxu0 0.0
        %658 = vmatpush2.msra.mxu0 0.0
        %659 = vmatprep.subr.mxu0 0.0
        %660 = vmatpush2.msra.mxu0 0.0
        %661 = vmatprep.subr.mxu0 0.0
        %662 = vmatpush2.msra.mxu0 0.0
        %663 = vmatprep.subr.mxu0 0.0
        %664 = vmatpush2.msra.mxu0 0.0
        %665 = vmatprep.subr.mxu0 0.0
        %666 = vmatpush2.msra.mxu0 0.0
        %667 = vmatprep.subr.mxu0 0.0
        %668 = vmatpush2.msra.mxu0 0.0
        %669 = vmatprep.mubr.f32.mxu0 0.0
        %670 = vmatmul.mubr.f32.gmra.mxu0 %v603
        %v671 = vpop.f32.mrf.mxu0
        %v672 = vadd.f32 %v498, %v671
        %v673 = vpop.f32.mrf.mxu0
        %674 = vdwg.mxu0
        %v675 = vld [vmem:[%s480] sm:$0xff]
        %v676 = vld [vmem:[%s480 + $0x8] sm:$0xff]
        %v677 = vld [vmem:[%s480 + $0x10] sm:$0xff]
        %v678 = vld [vmem:[%s480 + $0x18] sm:$0xff]
        %v679 = vld [vmem:[%s480 + $0x20] sm:$0xff]
        %v680 = vld [vmem:[%s480 + $0x28] sm:$0xff]
        %v681 = vld [vmem:[%s480 + $0x30] sm:$0xff]
        %v682 = vld [vmem:[%s480 + $0x38] sm:$0xff]
        %v683 = vld [vmem:[%s480 + $0x40] sm:$0xff]
        %v684 = vld [vmem:[%s480 + $0x48] sm:$0xff]
        %v685 = vld [vmem:[%s480 + $0x50] sm:$0xff]
        %v686 = vld [vmem:[%s480 + $0x58] sm:$0xff]
        %v687 = vld [vmem:[%s480 + $0x60] sm:$0xff]
        %v688 = vld [vmem:[%s480 + $0x68] sm:$0xff]
        %v689 = vld [vmem:[%s480 + $0x70] sm:$0xff]
        %v690 = vld [vmem:[%s480 + $0x78] sm:$0xff]
        %v691 = vld [vmem:[%s6] sm:$0xff]
        %v692 = vld [vmem:[%s6 + $0x8] sm:$0xff]
        %v693 = vld [vmem:[%s6 + $0x10] sm:$0xff]
        %v694 = vld [vmem:[%s6 + $0x18] sm:$0xff]
        %v695 = vld [vmem:[%s7] sm:$0x1]
        %v697 = vlaneseq
        %v698 = vshrl.u32 %v697, 7
        %v699 = vsub.s32 0, %v698
        %v700 = vrot.slane %v695, %v699
        %v703 = vsel %vm518, %v675, 0
        %v706 = vsel %vm518, %v676, 0
        %v709 = vsel %vm518, %v677, 0
        %v712 = vsel %vm518, %v678, 0
        %v715 = vsel %vm518, %v679, 0
        %v718 = vsel %vm518, %v680, 0
        %v721 = vsel %vm518, %v681, 0
        %v724 = vsel %vm518, %v682, 0
        %v727 = vsel %vm518, %v683, 0
        %v730 = vsel %vm518, %v684, 0
        %v733 = vsel %vm518, %v685, 0
        %v736 = vsel %vm518, %v686, 0
        %v739 = vsel %vm518, %v687, 0
        %v742 = vsel %vm518, %v688, 0
        %v745 = vsel %vm518, %v689, 0
        %v748 = vsel %vm518, %v690, 0
        %750 = vmatprep.subr.mxu0 0.0
        %751 = vmatpush1.msra.mxu0 0.0
        %752 = vmatprep.subr.mxu0 0.0
        %753 = vmatpush1.msra.mxu0 0.0
        %754 = vmatprep.subr.mxu0 0.0
        %755 = vmatpush1.msra.mxu0 0.0
        %756 = vmatprep.subr.mxu0 0.0
        %757 = vmatpush1.msra.mxu0 0.0
        %758 = vmatprep.subr.mxu0 0.0
        %759 = vmatpush1.msra.mxu0 0.0
        %760 = vmatprep.subr.mxu0 0.0
        %761 = vmatpush1.msra.mxu0 0.0
        %762 = vmatprep.subr.mxu0 0.0
        %763 = vmatpush1.msra.mxu0 0.0
        %764 = vmatprep.subr.mxu0 0.0
        %765 = vmatpush1.msra.mxu0 0.0
        %766 = vmatprep.subr.mxu0 0.0
        %767 = vmatpush1.msra.mxu0 0.0
        %768 = vmatprep.subr.mxu0 0.0
        %769 = vmatpush1.msra.mxu0 0.0
        %770 = vmatprep.subr.mxu0 0.0
        %771 = vmatpush1.msra.mxu0 0.0
        %772 = vmatprep.subr.mxu0 0.0
        %773 = vmatpush1.msra.mxu0 0.0
        %774 = vmatprep.subr.mxu0 0.0
        %775 = vmatpush1.msra.mxu0 %v694
        %776 = vmatprep.subr.mxu0 0.0
        %777 = vmatpush1.msra.mxu0 %v693
        %778 = vmatprep.subr.mxu0 0.0
        %779 = vmatpush1.msra.mxu0 %v692
        %780 = vmatprep.subr.mxu0 0.0
        %781 = vmatpush1.msra.mxu0 %v691
        %782 = vmatprep.subr.mxu0 0.0
        %783 = vmatpush2.msra.mxu0 0.0
        %784 = vmatprep.subr.mxu0 0.0
        %785 = vmatpush2.msra.mxu0 0.0
        %786 = vmatprep.subr.mxu0 0.0
        %787 = vmatpush2.msra.mxu0 0.0
        %788 = vmatprep.subr.mxu0 0.0
        %789 = vmatpush2.msra.mxu0 0.0
        %790 = vmatprep.subr.mxu0 0.0
        %791 = vmatpush2.msra.mxu0 0.0
        %792 = vmatprep.subr.mxu0 0.0
        %793 = vmatpush2.msra.mxu0 0.0
        %794 = vmatprep.subr.mxu0 0.0
        %795 = vmatpush2.msra.mxu0 0.0
        %796 = vmatprep.subr.mxu0 0.0
        %797 = vmatpush2.msra.mxu0 0.0
        %798 = vmatprep.subr.mxu0 0.0
        %799 = vmatpush2.msra.mxu0 0.0
        %800 = vmatprep.subr.mxu0 0.0
        %801 = vmatpush2.msra.mxu0 0.0
        %802 = vmatprep.subr.mxu0 0.0
        %803 = vmatpush2.msra.mxu0 0.0
        %804 = vmatprep.subr.mxu0 0.0
        %805 = vmatpush2.msra.mxu0 0.0
        %806 = vmatprep.subr.mxu0 0.0
        %807 = vmatpush2.msra.mxu0 0.0
        %808 = vmatprep.subr.mxu0 0.0
        %809 = vmatpush2.msra.mxu0 0.0
        %810 = vmatprep.subr.mxu0 0.0
        %811 = vmatpush2.msra.mxu0 0.0
        %812 = vmatprep.subr.mxu0 0.0
        %813 = vmatpush2.msra.mxu0 0.0
        %814 = vmatprep.mubr.f32.mxu0 0.0
        %815 = vmatmul.mubr.f32.gmra.mxu0 %v703
        %v816 = vpop.f32.mrf.mxu0
        %v817 = vadd.f32 %v700, %v816
        %v818 = vpop.f32.mrf.mxu0
        %819 = vmatprep.mubr.f32.mxu0 0.0
        %820 = vmatmul.mubr.f32.gmra.mxu0 %v706
        %v821 = vpop.f32.mrf.mxu0
        %v822 = vadd.f32 %v700, %v821
        %v823 = vpop.f32.mrf.mxu0
        %824 = vmatprep.mubr.f32.mxu0 0.0
        %825 = vmatmul.mubr.f32.gmra.mxu0 %v709
        %v826 = vpop.f32.mrf.mxu0
        %v827 = vadd.f32 %v700, %v826
        %v828 = vpop.f32.mrf.mxu0
        %829 = vmatprep.mubr.f32.mxu0 0.0
        %830 = vmatmul.mubr.f32.gmra.mxu0 %v712
        %v831 = vpop.f32.mrf.mxu0
        %v832 = vadd.f32 %v700, %v831
        %v833 = vpop.f32.mrf.mxu0
        %834 = vmatprep.mubr.f32.mxu0 0.0
        %835 = vmatmul.mubr.f32.gmra.mxu0 %v715
        %v836 = vpop.f32.mrf.mxu0
        %v837 = vadd.f32 %v700, %v836
        %v838 = vpop.f32.mrf.mxu0
        %839 = vmatprep.mubr.f32.mxu0 0.0
        %840 = vmatmul.mubr.f32.gmra.mxu0 %v718
        %v841 = vpop.f32.mrf.mxu0
        %v842 = vadd.f32 %v700, %v841
        %v843 = vpop.f32.mrf.mxu0
        %844 = vmatprep.mubr.f32.mxu0 0.0
        %845 = vmatmul.mubr.f32.gmra.mxu0 %v721
        %v846 = vpop.f32.mrf.mxu0
        %v847 = vadd.f32 %v700, %v846
        %v848 = vpop.f32.mrf.mxu0
        %849 = vmatprep.mubr.f32.mxu0 0.0
        %850 = vmatmul.mubr.f32.gmra.mxu0 %v724
        %v851 = vpop.f32.mrf.mxu0
        %v852 = vadd.f32 %v700, %v851
        %v853 = vpop.f32.mrf.mxu0
        %854 = vmatprep.mubr.f32.mxu0 0.0
        %855 = vmatmul.mubr.f32.gmra.mxu0 %v727
        %v856 = vpop.f32.mrf.mxu0
        %v857 = vadd.f32 %v700, %v856
        %v858 = vpop.f32.mrf.mxu0
        %859 = vmatprep.mubr.f32.mxu0 0.0
        %860 = vmatmul.mubr.f32.gmra.mxu0 %v730
        %v861 = vpop.f32.mrf.mxu0
        %v862 = vadd.f32 %v700, %v861
        %v863 = vpop.f32.mrf.mxu0
        %864 = vmatprep.mubr.f32.mxu0 0.0
        %865 = vmatmul.mubr.f32.gmra.mxu0 %v733
        %v866 = vpop.f32.mrf.mxu0
        %v867 = vadd.f32 %v700, %v866
        %v868 = vpop.f32.mrf.mxu0
        %869 = vmatprep.mubr.f32.mxu0 0.0
        %870 = vmatmul.mubr.f32.gmra.mxu0 %v736
        %v871 = vpop.f32.mrf.mxu0
        %v872 = vadd.f32 %v700, %v871
        %v873 = vpop.f32.mrf.mxu0
        %874 = vmatprep.mubr.f32.mxu0 0.0
        %875 = vmatmul.mubr.f32.gmra.mxu0 %v739
        %v876 = vpop.f32.mrf.mxu0
        %v877 = vadd.f32 %v700, %v876
        %v878 = vpop.f32.mrf.mxu0
        %879 = vmatprep.mubr.f32.mxu0 0.0
        %880 = vmatmul.mubr.f32.gmra.mxu0 %v742
        %v881 = vpop.f32.mrf.mxu0
        %v882 = vadd.f32 %v700, %v881
        %v883 = vpop.f32.mrf.mxu0
        %884 = vmatprep.mubr.f32.mxu0 0.0
        %885 = vmatmul.mubr.f32.gmra.mxu0 %v745
        %v886 = vpop.f32.mrf.mxu0
        %v887 = vadd.f32 %v700, %v886
        %v888 = vpop.f32.mrf.mxu0
        %889 = vmatprep.mubr.f32.mxu0 0.0
        %890 = vmatmul.mubr.f32.gmra.mxu0 %v748
        %v891 = vpop.f32.mrf.mxu0
        %v892 = vadd.f32 %v700, %v891
        %v893 = vpop.f32.mrf.mxu0
        %894 = vdwg.mxu0
        %v895 = vtanh.pop %v817
        %v896 = vtanh.pop %v822
        %v897 = vtanh.pop %v827
        %v898 = vtanh.pop %v832
        %v899 = vtanh.pop %v837
        %v900 = vtanh.pop %v842
        %v901 = vtanh.pop %v847
        %v902 = vtanh.pop %v852
        %v903 = vtanh.pop %v857
        %v904 = vtanh.pop %v862
        %v905 = vtanh.pop %v867
        %v906 = vtanh.pop %v872
        %v907 = vtanh.pop %v877
        %v908 = vtanh.pop %v882
        %v909 = vtanh.pop %v887
        %v910 = vtanh.pop %v892
        %v912 = vcombine.high %v672, %v672
        %v914 = vunpack.c.l.s4 1966171168
        %v915 = vunpack.c.0.s8 %v914
        %v916 = vlaneseq
        %v917 = vshrl.u32 %v916, 7
        %v918 = vsub.s32 %v915, %v917
        %v919 = vrot.slane %v672, %v918
        %v921 = vunpack.c.l.s4 1966171168
        %v922 = vunpack.c.0.s8 %v921
        %v923 = vlaneseq
        %v924 = vshrl.u32 %v923, 7
        %v925 = vsub.s32 %v922, %v924
        %v926 = vrot.slane %v912, %v925
        %v927 = vcombine.high %v919, %v919
        %v928 = vcombine.high %v926, %v926
        %v930 = vunpack.c.l.s4 1966171168
        %v931 = vunpack.c.0.s8 %v930
        %v932 = vlaneseq
        %v933 = vshrl.u32 %v932, 7
        %v934 = vsub.s32 %v931, %v933
        %v935 = vrot.slane %v919, %v934
        %v937 = vunpack.c.l.s4 1966171168
        %v938 = vunpack.c.0.s8 %v937
        %v939 = vlaneseq
        %v940 = vshrl.u32 %v939, 7
        %v941 = vsub.s32 %v938, %v940
        %v942 = vrot.slane %v926, %v941
        %v944 = vunpack.c.l.s4 1966171168
        %v945 = vunpack.c.0.s8 %v944
        %v946 = vlaneseq
        %v947 = vshrl.u32 %v946, 7
        %v948 = vsub.s32 %v945, %v947
        %v949 = vrot.slane %v927, %v948
        %v951 = vunpack.c.l.s4 1966171168
        %v952 = vunpack.c.0.s8 %v951
        %v953 = vlaneseq
        %v954 = vshrl.u32 %v953, 7
        %v955 = vsub.s32 %v952, %v954
        %v956 = vrot.slane %v928, %v955
        %v957 = vcombine.high %v935, %v935
        %v958 = vcombine.high %v942, %v942
        %v959 = vcombine.high %v949, %v949
        %v960 = vcombine.high %v956, %v956
        %v961 = vlaneseq
        %v962 = vshrl.u32 %v961, 7
        %v963 = vsub.s32 0, %v962
        %v964 = vrot.slane %v935, %v963
        %v965 = vlaneseq
        %v966 = vshrl.u32 %v965, 7
        %v967 = vsub.s32 0, %v966
        %v968 = vrot.slane %v949, %v967
        %v969 = vlaneseq
        %v970 = vshrl.u32 %v969, 7
        %v971 = vsub.s32 0, %v970
        %v972 = vrot.slane %v957, %v971
        %v973 = vlaneseq
        %v974 = vshrl.u32 %v973, 7
        %v975 = vsub.s32 0, %v974
        %v976 = vrot.slane %v959, %v975
        %v977 = vlaneseq
        %v978 = vshrl.u32 %v977, 7
        %v979 = vsub.s32 0, %v978
        %v980 = vrot.slane %v942, %v979
        %v981 = vlaneseq
        %v982 = vshrl.u32 %v981, 7
        %v983 = vsub.s32 0, %v982
        %v984 = vrot.slane %v956, %v983
        %v985 = vlaneseq
        %v986 = vshrl.u32 %v985, 7
        %v987 = vsub.s32 0, %v986
        %v988 = vrot.slane %v958, %v987
        %v989 = vlaneseq
        %v990 = vshrl.u32 %v989, 7
        %v991 = vsub.s32 0, %v990
        %v992 = vrot.slane %v960, %v991
        %v1001 = vmul.f32 %v964, %v592
        %v1002 = vmul.f32 %v964, %v597
        %v1003 = vmul.f32 %v968, %v592
        %v1004 = vmul.f32 %v968, %v597
        %v1005 = vmul.f32 %v972, %v592
        %v1006 = vmul.f32 %v972, %v597
        %v1007 = vmul.f32 %v976, %v592
        %v1008 = vmul.f32 %v976, %v597
        %v1009 = vmul.f32 %v980, %v592
        %v1010 = vmul.f32 %v980, %v597
        %v1011 = vmul.f32 %v984, %v592
        %v1012 = vmul.f32 %v984, %v597
        %v1013 = vmul.f32 %v988, %v592
        %v1014 = vmul.f32 %v988, %v597
        %v1015 = vmul.f32 %v992, %v592
        %v1016 = vmul.f32 %v992, %v597
        %v1017 = vmul.f32 %v1001, %v895
        %v1018 = vmul.f32 %v1002, %v896
        %v1019 = vmul.f32 %v1003, %v897
        %v1020 = vmul.f32 %v1004, %v898
        %v1021 = vmul.f32 %v1005, %v899
        %v1022 = vmul.f32 %v1006, %v900
        %v1023 = vmul.f32 %v1007, %v901
        %v1024 = vmul.f32 %v1008, %v902
        %v1025 = vmul.f32 %v1009, %v903
        %v1026 = vmul.f32 %v1010, %v904
        %v1027 = vmul.f32 %v1011, %v905
        %v1028 = vmul.f32 %v1012, %v906
        %v1029 = vmul.f32 %v1013, %v907
        %v1030 = vmul.f32 %v1014, %v908
        %v1031 = vmul.f32 %v1015, %v909
        %v1032 = vmul.f32 %v1016, %v910
        %v1033 = vld [vmem:[%s10] sm:$0xff]
        %v1034 = vld [vmem:[%s10 + $0x8] sm:$0xff]
        %v1035 = vld [vmem:[%s10 + $0x10] sm:$0xff]
        %v1036 = vld [vmem:[%s10 + $0x18] sm:$0xff]
        %v1037 = vld [vmem:[%s11] sm:$0x1]
        %v1039 = vlaneseq
        %v1040 = vshrl.u32 %v1039, 7
        %v1041 = vsub.s32 0, %v1040
        %v1042 = vrot.slane %v1037, %v1041
        %v1045 = vsel %vm518, %v1017, 0
        %v1048 = vsel %vm518, %v1018, 0
        %v1051 = vsel %vm518, %v1019, 0
        %v1054 = vsel %vm518, %v1020, 0
        %v1057 = vsel %vm518, %v1021, 0
        %v1060 = vsel %vm518, %v1022, 0
        %v1063 = vsel %vm518, %v1023, 0
        %v1066 = vsel %vm518, %v1024, 0
        %v1069 = vsel %vm518, %v1025, 0
        %v1072 = vsel %vm518, %v1026, 0
        %v1075 = vsel %vm518, %v1027, 0
        %v1078 = vsel %vm518, %v1028, 0
        %v1081 = vsel %vm518, %v1029, 0
        %v1084 = vsel %vm518, %v1030, 0
        %v1087 = vsel %vm518, %v1031, 0
        %v1090 = vsel %vm518, %v1032, 0
        %1092 = vmatprep.subr.mxu0 0.0
        %1093 = vmatpush1.msra.mxu0 0.0
        %1094 = vmatprep.subr.mxu0 0.0
        %1095 = vmatpush1.msra.mxu0 0.0
        %1096 = vmatprep.subr.mxu0 0.0
        %1097 = vmatpush1.msra.mxu0 0.0
        %1098 = vmatprep.subr.mxu0 0.0
        %1099 = vmatpush1.msra.mxu0 0.0
        %1100 = vmatprep.subr.mxu0 0.0
        %1101 = vmatpush1.msra.mxu0 0.0
        %1102 = vmatprep.subr.mxu0 0.0
        %1103 = vmatpush1.msra.mxu0 0.0
        %1104 = vmatprep.subr.mxu0 0.0
        %1105 = vmatpush1.msra.mxu0 0.0
        %1106 = vmatprep.subr.mxu0 0.0
        %1107 = vmatpush1.msra.mxu0 0.0
        %1108 = vmatprep.subr.mxu0 0.0
        %1109 = vmatpush1.msra.mxu0 0.0
        %1110 = vmatprep.subr.mxu0 0.0
        %1111 = vmatpush1.msra.mxu0 0.0
        %1112 = vmatprep.subr.mxu0 0.0
        %1113 = vmatpush1.msra.mxu0 0.0
        %1114 = vmatprep.subr.mxu0 0.0
        %1115 = vmatpush1.msra.mxu0 0.0
        %1116 = vmatprep.subr.mxu0 0.0
        %1117 = vmatpush1.msra.mxu0 %v1036
        %1118 = vmatprep.subr.mxu0 0.0
        %1119 = vmatpush1.msra.mxu0 %v1035
        %1120 = vmatprep.subr.mxu0 0.0
        %1121 = vmatpush1.msra.mxu0 %v1034
        %1122 = vmatprep.subr.mxu0 0.0
        %1123 = vmatpush1.msra.mxu0 %v1033
        %1124 = vmatprep.subr.mxu0 0.0
        %1125 = vmatpush2.msra.mxu0 0.0
        %1126 = vmatprep.subr.mxu0 0.0
        %1127 = vmatpush2.msra.mxu0 0.0
        %1128 = vmatprep.subr.mxu0 0.0
        %1129 = vmatpush2.msra.mxu0 0.0
        %1130 = vmatprep.subr.mxu0 0.0
        %1131 = vmatpush2.msra.mxu0 0.0
        %1132 = vmatprep.subr.mxu0 0.0
        %1133 = vmatpush2.msra.mxu0 0.0
        %1134 = vmatprep.subr.mxu0 0.0
        %1135 = vmatpush2.msra.mxu0 0.0
        %1136 = vmatprep.subr.mxu0 0.0
        %1137 = vmatpush2.msra.mxu0 0.0
        %1138 = vmatprep.subr.mxu0 0.0
        %1139 = vmatpush2.msra.mxu0 0.0
        %1140 = vmatprep.subr.mxu0 0.0
        %1141 = vmatpush2.msra.mxu0 0.0
        %1142 = vmatprep.subr.mxu0 0.0
        %1143 = vmatpush2.msra.mxu0 0.0
        %1144 = vmatprep.subr.mxu0 0.0
        %1145 = vmatpush2.msra.mxu0 0.0
        %1146 = vmatprep.subr.mxu0 0.0
        %1147 = vmatpush2.msra.mxu0 0.0
        %1148 = vmatprep.subr.mxu0 0.0
        %1149 = vmatpush2.msra.mxu0 0.0
        %1150 = vmatprep.subr.mxu0 0.0
        %1151 = vmatpush2.msra.mxu0 0.0
        %1152 = vmatprep.subr.mxu0 0.0
        %1153 = vmatpush2.msra.mxu0 0.0
        %1154 = vmatprep.subr.mxu0 0.0
        %1155 = vmatpush2.msra.mxu0 0.0
        %1156 = vmatprep.mubr.f32.mxu0 0.0
        %1157 = vmatmul.mubr.f32.gmra.mxu0 %v1045
        %v1158 = vpop.f32.mrf.mxu0
        %v1159 = vadd.f32 %v1042, %v1158
        %v1160 = vpop.f32.mrf.mxu0
        %1161 = vmatprep.mubr.f32.mxu0 0.0
        %1162 = vmatmul.mubr.f32.gmra.mxu0 %v1048
        %v1163 = vpop.f32.mrf.mxu0
        %v1164 = vadd.f32 %v1042, %v1163
        %v1165 = vpop.f32.mrf.mxu0
        %1166 = vmatprep.mubr.f32.mxu0 0.0
        %1167 = vmatmul.mubr.f32.gmra.mxu0 %v1051
        %v1168 = vpop.f32.mrf.mxu0
        %v1169 = vadd.f32 %v1042, %v1168
        %v1170 = vpop.f32.mrf.mxu0
        %1171 = vmatprep.mubr.f32.mxu0 0.0
        %1172 = vmatmul.mubr.f32.gmra.mxu0 %v1054
        %v1173 = vpop.f32.mrf.mxu0
        %v1174 = vadd.f32 %v1042, %v1173
        %v1175 = vpop.f32.mrf.mxu0
        %1176 = vmatprep.mubr.f32.mxu0 0.0
        %1177 = vmatmul.mubr.f32.gmra.mxu0 %v1057
        %v1178 = vpop.f32.mrf.mxu0
        %v1179 = vadd.f32 %v1042, %v1178
        %v1180 = vpop.f32.mrf.mxu0
        %1181 = vmatprep.mubr.f32.mxu0 0.0
        %1182 = vmatmul.mubr.f32.gmra.mxu0 %v1060
        %v1183 = vpop.f32.mrf.mxu0
        %v1184 = vadd.f32 %v1042, %v1183
        %v1185 = vpop.f32.mrf.mxu0
        %1186 = vmatprep.mubr.f32.mxu0 0.0
        %1187 = vmatmul.mubr.f32.gmra.mxu0 %v1063
        %v1188 = vpop.f32.mrf.mxu0
        %v1189 = vadd.f32 %v1042, %v1188
        %v1190 = vpop.f32.mrf.mxu0
        %1191 = vmatprep.mubr.f32.mxu0 0.0
        %1192 = vmatmul.mubr.f32.gmra.mxu0 %v1066
        %v1193 = vpop.f32.mrf.mxu0
        %v1194 = vadd.f32 %v1042, %v1193
        %v1195 = vpop.f32.mrf.mxu0
        %1196 = vmatprep.mubr.f32.mxu0 0.0
        %1197 = vmatmul.mubr.f32.gmra.mxu0 %v1069
        %v1198 = vpop.f32.mrf.mxu0
        %v1199 = vadd.f32 %v1042, %v1198
        %v1200 = vpop.f32.mrf.mxu0
        %1201 = vmatprep.mubr.f32.mxu0 0.0
        %1202 = vmatmul.mubr.f32.gmra.mxu0 %v1072
        %v1203 = vpop.f32.mrf.mxu0
        %v1204 = vadd.f32 %v1042, %v1203
        %v1205 = vpop.f32.mrf.mxu0
        %1206 = vmatprep.mubr.f32.mxu0 0.0
        %1207 = vmatmul.mubr.f32.gmra.mxu0 %v1075
        %v1208 = vpop.f32.mrf.mxu0
        %v1209 = vadd.f32 %v1042, %v1208
        %v1210 = vpop.f32.mrf.mxu0
        %1211 = vmatprep.mubr.f32.mxu0 0.0
        %1212 = vmatmul.mubr.f32.gmra.mxu0 %v1078
        %v1213 = vpop.f32.mrf.mxu0
        %v1214 = vadd.f32 %v1042, %v1213
        %v1215 = vpop.f32.mrf.mxu0
        %1216 = vmatprep.mubr.f32.mxu0 0.0
        %1217 = vmatmul.mubr.f32.gmra.mxu0 %v1081
        %v1218 = vpop.f32.mrf.mxu0
        %v1219 = vadd.f32 %v1042, %v1218
        %v1220 = vpop.f32.mrf.mxu0
        %1221 = vmatprep.mubr.f32.mxu0 0.0
        %1222 = vmatmul.mubr.f32.gmra.mxu0 %v1084
        %v1223 = vpop.f32.mrf.mxu0
        %v1224 = vadd.f32 %v1042, %v1223
        %v1225 = vpop.f32.mrf.mxu0
        %1226 = vmatprep.mubr.f32.mxu0 0.0
        %1227 = vmatmul.mubr.f32.gmra.mxu0 %v1087
        %v1228 = vpop.f32.mrf.mxu0
        %v1229 = vadd.f32 %v1042, %v1228
        %v1230 = vpop.f32.mrf.mxu0
        %1231 = vmatprep.mubr.f32.mxu0 0.0
        %1232 = vmatmul.mubr.f32.gmra.mxu0 %v1090
        %v1233 = vpop.f32.mrf.mxu0
        %v1234 = vadd.f32 %v1042, %v1233
        %v1235 = vpop.f32.mrf.mxu0
        %1236 = vdwg.mxu0
        %1237 = vst [vmem:[%s471] sm:$0xff] %v1159
        %1238 = vst [vmem:[%s471 + $0x8] sm:$0xff] %v1164
        %1239 = vst [vmem:[%s471 + $0x10] sm:$0xff] %v1169
        %1240 = vst [vmem:[%s471 + $0x18] sm:$0xff] %v1174
        %1241 = vst [vmem:[%s471 + $0x20] sm:$0xff] %v1179
        %1242 = vst [vmem:[%s471 + $0x28] sm:$0xff] %v1184
        %1243 = vst [vmem:[%s471 + $0x30] sm:$0xff] %v1189
        %1244 = vst [vmem:[%s471 + $0x38] sm:$0xff] %v1194
        %1245 = vst [vmem:[%s471 + $0x40] sm:$0xff] %v1199
        %1246 = vst [vmem:[%s471 + $0x48] sm:$0xff] %v1204
        %1247 = vst [vmem:[%s471 + $0x50] sm:$0xff] %v1209
        %1248 = vst [vmem:[%s471 + $0x58] sm:$0xff] %v1214
        %1249 = vst [vmem:[%s471 + $0x60] sm:$0xff] %v1219
        %1250 = vst [vmem:[%s471 + $0x68] sm:$0xff] %v1224
        %1251 = vst [vmem:[%s471 + $0x70] sm:$0xff] %v1229
        %1252 = vst [vmem:[%s471 + $0x78] sm:$0xff] %v1234
        %1253 = vxpose.xlu0.b32.start [1/16] %v1159, 128
        %1254 = vxpose.xlu0.b32.cont [2/16] %v1164, 128
        %1255 = vxpose.xlu0.b32.cont [3/16] 0.0, 128
        %1256 = vxpose.xlu0.b32.cont [4/16] 0.0, 128
        %1257 = vxpose.xlu0.b32.cont [5/16] 0.0, 128
        %1258 = vxpose.xlu0.b32.cont [6/16] 0.0, 128
        %1259 = vxpose.xlu0.b32.cont [7/16] 0.0, 128
        %1260 = vxpose.xlu0.b32.cont [8/16] 0.0, 128
        %1261 = vxpose.xlu0.b32.cont [9/16] 0.0, 128
        %1262 = vxpose.xlu0.b32.cont [10/16] 0.0, 128
        %1263 = vxpose.xlu0.b32.cont [11/16] 0.0, 128
        %1264 = vxpose.xlu0.b32.cont [12/16] 0.0, 128
        %1265 = vxpose.xlu0.b32.cont [13/16] 0.0, 128
        %1266 = vxpose.xlu0.b32.cont [14/16] 0.0, 128
        %1267 = vxpose.xlu0.b32.cont [15/16] 0.0, 128
        %1268 = vxpose.xlu0.b32.end [16/16] 0.0, 128
        %v1269 = vpop.trf.xlu0
        %v1270 = vpop.trf.xlu0
        %v1271 = vpop.trf.xlu0
        %v1272 = vpop.trf.xlu0
        %v1273 = vpop.trf.xlu0
        %v1274 = vpop.trf.xlu0
        %v1275 = vpop.trf.xlu0
        %v1276 = vpop.trf.xlu0
        %v1277 = vpop.trf.xlu0
        %v1278 = vpop.trf.xlu0
        %v1279 = vpop.trf.xlu0
        %v1280 = vpop.trf.xlu0
        %v1281 = vpop.trf.xlu0
        %v1282 = vpop.trf.xlu0
        %v1283 = vpop.trf.xlu0
        %v1284 = vpop.trf.xlu0
        %1285 = vxpose.xlu0.b32.start [1/16] %v1169, 128
        %1286 = vxpose.xlu0.b32.cont [2/16] %v1174, 128
        %1287 = vxpose.xlu0.b32.cont [3/16] 0.0, 128
        %1288 = vxpose.xlu0.b32.cont [4/16] 0.0, 128
        %1289 = vxpose.xlu0.b32.cont [5/16] 0.0, 128
        %1290 = vxpose.xlu0.b32.cont [6/16] 0.0, 128
        %1291 = vxpose.xlu0.b32.cont [7/16] 0.0, 128
        %1292 = vxpose.xlu0.b32.cont [8/16] 0.0, 128
        %1293 = vxpose.xlu0.b32.cont [9/16] 0.0, 128
        %1294 = vxpose.xlu0.b32.cont [10/16] 0.0, 128
        %1295 = vxpose.xlu0.b32.cont [11/16] 0.0, 128
        %1296 = vxpose.xlu0.b32.cont [12/16] 0.0, 128
        %1297 = vxpose.xlu0.b32.cont [13/16] 0.0, 128
        %1298 = vxpose.xlu0.b32.cont [14/16] 0.0, 128
        %1299 = vxpose.xlu0.b32.cont [15/16] 0.0, 128
        %1300 = vxpose.xlu0.b32.end [16/16] 0.0, 128
        %v1301 = vpop.trf.xlu0
        %v1302 = vpop.trf.xlu0
        %v1303 = vpop.trf.xlu0
        %v1304 = vpop.trf.xlu0
        %v1305 = vpop.trf.xlu0
        %v1306 = vpop.trf.xlu0
        %v1307 = vpop.trf.xlu0
        %v1308 = vpop.trf.xlu0
        %v1309 = vpop.trf.xlu0
        %v1310 = vpop.trf.xlu0
        %v1311 = vpop.trf.xlu0
        %v1312 = vpop.trf.xlu0
        %v1313 = vpop.trf.xlu0
        %v1314 = vpop.trf.xlu0
        %v1315 = vpop.trf.xlu0
        %v1316 = vpop.trf.xlu0
        %1317 = vxpose.xlu0.b32.start [1/16] %v1179, 128
        %1318 = vxpose.xlu0.b32.cont [2/16] %v1184, 128
        %1319 = vxpose.xlu0.b32.cont [3/16] 0.0, 128
        %1320 = vxpose.xlu0.b32.cont [4/16] 0.0, 128
        %1321 = vxpose.xlu0.b32.cont [5/16] 0.0, 128
        %1322 = vxpose.xlu0.b32.cont [6/16] 0.0, 128
        %1323 = vxpose.xlu0.b32.cont [7/16] 0.0, 128
        %1324 = vxpose.xlu0.b32.cont [8/16] 0.0, 128
        %1325 = vxpose.xlu0.b32.cont [9/16] 0.0, 128
        %1326 = vxpose.xlu0.b32.cont [10/16] 0.0, 128
        %1327 = vxpose.xlu0.b32.cont [11/16] 0.0, 128
        %1328 = vxpose.xlu0.b32.cont [12/16] 0.0, 128
        %1329 = vxpose.xlu0.b32.cont [13/16] 0.0, 128
        %1330 = vxpose.xlu0.b32.cont [14/16] 0.0, 128
        %1331 = vxpose.xlu0.b32.cont [15/16] 0.0, 128
        %1332 = vxpose.xlu0.b32.end [16/16] 0.0, 128
        %v1333 = vpop.trf.xlu0
        %v1334 = vpop.trf.xlu0
        %v1335 = vpop.trf.xlu0
        %v1336 = vpop.trf.xlu0
        %v1337 = vpop.trf.xlu0
        %v1338 = vpop.trf.xlu0
        %v1339 = vpop.trf.xlu0
        %v1340 = vpop.trf.xlu0
        %v1341 = vpop.trf.xlu0
        %v1342 = vpop.trf.xlu0
        %v1343 = vpop.trf.xlu0
        %v1344 = vpop.trf.xlu0
        %v1345 = vpop.trf.xlu0
        %v1346 = vpop.trf.xlu0
        %v1347 = vpop.trf.xlu0
        %v1348 = vpop.trf.xlu0
        %1349 = vxpose.xlu0.b32.start [1/16] %v1189, 128
        %1350 = vxpose.xlu0.b32.cont [2/16] %v1194, 128
        %1351 = vxpose.xlu0.b32.cont [3/16] 0.0, 128
        %1352 = vxpose.xlu0.b32.cont [4/16] 0.0, 128
        %1353 = vxpose.xlu0.b32.cont [5/16] 0.0, 128
        %1354 = vxpose.xlu0.b32.cont [6/16] 0.0, 128
        %1355 = vxpose.xlu0.b32.cont [7/16] 0.0, 128
        %1356 = vxpose.xlu0.b32.cont [8/16] 0.0, 128
        %1357 = vxpose.xlu0.b32.cont [9/16] 0.0, 128
        %1358 = vxpose.xlu0.b32.cont [10/16] 0.0, 128
        %1359 = vxpose.xlu0.b32.cont [11/16] 0.0, 128
        %1360 = vxpose.xlu0.b32.cont [12/16] 0.0, 128
        %1361 = vxpose.xlu0.b32.cont [13/16] 0.0, 128
        %1362 = vxpose.xlu0.b32.cont [14/16] 0.0, 128
        %1363 = vxpose.xlu0.b32.cont [15/16] 0.0, 128
        %1364 = vxpose.xlu0.b32.end [16/16] 0.0, 128
        %v1365 = vpop.trf.xlu0
        %v1366 = vpop.trf.xlu0
        %v1367 = vpop.trf.xlu0
        %v1368 = vpop.trf.xlu0
        %v1369 = vpop.trf.xlu0
        %v1370 = vpop.trf.xlu0
        %v1371 = vpop.trf.xlu0
        %v1372 = vpop.trf.xlu0
        %v1373 = vpop.trf.xlu0
        %v1374 = vpop.trf.xlu0
        %v1375 = vpop.trf.xlu0
        %v1376 = vpop.trf.xlu0
        %v1377 = vpop.trf.xlu0
        %v1378 = vpop.trf.xlu0
        %v1379 = vpop.trf.xlu0
        %v1380 = vpop.trf.xlu0
        %1381 = vxpose.xlu0.b32.start [1/16] %v1199, 128
        %1382 = vxpose.xlu0.b32.cont [2/16] %v1204, 128
        %1383 = vxpose.xlu0.b32.cont [3/16] 0.0, 128
        %1384 = vxpose.xlu0.b32.cont [4/16] 0.0, 128
        %1385 = vxpose.xlu0.b32.cont [5/16] 0.0, 128
        %1386 = vxpose.xlu0.b32.cont [6/16] 0.0, 128
        %1387 = vxpose.xlu0.b32.cont [7/16] 0.0, 128
        %1388 = vxpose.xlu0.b32.cont [8/16] 0.0, 128
        %1389 = vxpose.xlu0.b32.cont [9/16] 0.0, 128
        %1390 = vxpose.xlu0.b32.cont [10/16] 0.0, 128
        %1391 = vxpose.xlu0.b32.cont [11/16] 0.0, 128
        %1392 = vxpose.xlu0.b32.cont [12/16] 0.0, 128
        %1393 = vxpose.xlu0.b32.cont [13/16] 0.0, 128
        %1394 = vxpose.xlu0.b32.cont [14/16] 0.0, 128
        %1395 = vxpose.xlu0.b32.cont [15/16] 0.0, 128
        %1396 = vxpose.xlu0.b32.end [16/16] 0.0, 128
        %v1397 = vpop.trf.xlu0
        %v1398 = vpop.trf.xlu0
        %v1399 = vpop.trf.xlu0
        %v1400 = vpop.trf.xlu0
        %v1401 = vpop.trf.xlu0
        %v1402 = vpop.trf.xlu0
        %v1403 = vpop.trf.xlu0
        %v1404 = vpop.trf.xlu0
        %v1405 = vpop.trf.xlu0
        %v1406 = vpop.trf.xlu0
        %v1407 = vpop.trf.xlu0
        %v1408 = vpop.trf.xlu0
        %v1409 = vpop.trf.xlu0
        %v1410 = vpop.trf.xlu0
        %v1411 = vpop.trf.xlu0
        %v1412 = vpop.trf.xlu0
        %1413 = vxpose.xlu0.b32.start [1/16] %v1209, 128
        %1414 = vxpose.xlu0.b32.cont [2/16] %v1214, 128
        %1415 = vxpose.xlu0.b32.cont [3/16] 0.0, 128
        %1416 = vxpose.xlu0.b32.cont [4/16] 0.0, 128
        %1417 = vxpose.xlu0.b32.cont [5/16] 0.0, 128
        %1418 = vxpose.xlu0.b32.cont [6/16] 0.0, 128
        %1419 = vxpose.xlu0.b32.cont [7/16] 0.0, 128
        %1420 = vxpose.xlu0.b32.cont [8/16] 0.0, 128
        %1421 = vxpose.xlu0.b32.cont [9/16] 0.0, 128
        %1422 = vxpose.xlu0.b32.cont [10/16] 0.0, 128
        %1423 = vxpose.xlu0.b32.cont [11/16] 0.0, 128
        %1424 = vxpose.xlu0.b32.cont [12/16] 0.0, 128
        %1425 = vxpose.xlu0.b32.cont [13/16] 0.0, 128
        %1426 = vxpose.xlu0.b32.cont [14/16] 0.0, 128
        %1427 = vxpose.xlu0.b32.cont [15/16] 0.0, 128
        %1428 = vxpose.xlu0.b32.end [16/16] 0.0, 128
        %v1429 = vpop.trf.xlu0
        %v1430 = vpop.trf.xlu0
        %v1431 = vpop.trf.xlu0
        %v1432 = vpop.trf.xlu0
        %v1433 = vpop.trf.xlu0
        %v1434 = vpop.trf.xlu0
        %v1435 = vpop.trf.xlu0
        %v1436 = vpop.trf.xlu0
        %v1437 = vpop.trf.xlu0
        %v1438 = vpop.trf.xlu0
        %v1439 = vpop.trf.xlu0
        %v1440 = vpop.trf.xlu0
        %v1441 = vpop.trf.xlu0
        %v1442 = vpop.trf.xlu0
        %v1443 = vpop.trf.xlu0
        %v1444 = vpop.trf.xlu0
        %1445 = vxpose.xlu0.b32.start [1/16] %v1219, 128
        %1446 = vxpose.xlu0.b32.cont [2/16] %v1224, 128
        %1447 = vxpose.xlu0.b32.cont [3/16] 0.0, 128
        %1448 = vxpose.xlu0.b32.cont [4/16] 0.0, 128
        %1449 = vxpose.xlu0.b32.cont [5/16] 0.0, 128
        %1450 = vxpose.xlu0.b32.cont [6/16] 0.0, 128
        %1451 = vxpose.xlu0.b32.cont [7/16] 0.0, 128
        %1452 = vxpose.xlu0.b32.cont [8/16] 0.0, 128
        %1453 = vxpose.xlu0.b32.cont [9/16] 0.0, 128
        %1454 = vxpose.xlu0.b32.cont [10/16] 0.0, 128
        %1455 = vxpose.xlu0.b32.cont [11/16] 0.0, 128
        %1456 = vxpose.xlu0.b32.cont [12/16] 0.0, 128
        %1457 = vxpose.xlu0.b32.cont [13/16] 0.0, 128
        %1458 = vxpose.xlu0.b32.cont [14/16] 0.0, 128
        %1459 = vxpose.xlu0.b32.cont [15/16] 0.0, 128
        %1460 = vxpose.xlu0.b32.end [16/16] 0.0, 128
        %v1461 = vpop.trf.xlu0
        %v1462 = vpop.trf.xlu0
        %v1463 = vpop.trf.xlu0
        %v1464 = vpop.trf.xlu0
        %v1465 = vpop.trf.xlu0
        %v1466 = vpop.trf.xlu0
        %v1467 = vpop.trf.xlu0
        %v1468 = vpop.trf.xlu0
        %v1469 = vpop.trf.xlu0
        %v1470 = vpop.trf.xlu0
        %v1471 = vpop.trf.xlu0
        %v1472 = vpop.trf.xlu0
        %v1473 = vpop.trf.xlu0
        %v1474 = vpop.trf.xlu0
        %v1475 = vpop.trf.xlu0
        %v1476 = vpop.trf.xlu0
        %1477 = vxpose.xlu0.b32.start [1/16] %v1229, 128
        %1478 = vxpose.xlu0.b32.cont [2/16] %v1234, 128
        %1479 = vxpose.xlu0.b32.cont [3/16] 0.0, 128
        %1480 = vxpose.xlu0.b32.cont [4/16] 0.0, 128
        %1481 = vxpose.xlu0.b32.cont [5/16] 0.0, 128
        %1482 = vxpose.xlu0.b32.cont [6/16] 0.0, 128
        %1483 = vxpose.xlu0.b32.cont [7/16] 0.0, 128
        %1484 = vxpose.xlu0.b32.cont [8/16] 0.0, 128
        %1485 = vxpose.xlu0.b32.cont [9/16] 0.0, 128
        %1486 = vxpose.xlu0.b32.cont [10/16] 0.0, 128
        %1487 = vxpose.xlu0.b32.cont [11/16] 0.0, 128
        %1488 = vxpose.xlu0.b32.cont [12/16] 0.0, 128
        %1489 = vxpose.xlu0.b32.cont [13/16] 0.0, 128
        %1490 = vxpose.xlu0.b32.cont [14/16] 0.0, 128
        %1491 = vxpose.xlu0.b32.cont [15/16] 0.0, 128
        %1492 = vxpose.xlu0.b32.end [16/16] 0.0, 128
        %v1493 = vpop.trf.xlu0
        %v1494 = vpop.trf.xlu0
        %v1495 = vpop.trf.xlu0
        %v1496 = vpop.trf.xlu0
        %v1497 = vpop.trf.xlu0
        %v1498 = vpop.trf.xlu0
        %v1499 = vpop.trf.xlu0
        %v1500 = vpop.trf.xlu0
        %v1501 = vpop.trf.xlu0
        %v1502 = vpop.trf.xlu0
        %v1503 = vpop.trf.xlu0
        %v1504 = vpop.trf.xlu0
        %v1505 = vpop.trf.xlu0
        %v1506 = vpop.trf.xlu0
        %v1507 = vpop.trf.xlu0
        %v1508 = vpop.trf.xlu0
        %v1509 = vld [vmem:[%s485] sm:$0xff]
        %vm1510 = vcmp.gt.f32.partialorder %v1509, 0.5
        %v1511 = vsel %vm1510, 1, 0
        %v1512 = vcombine.high %v1511, %v1511
        %v1514 = vunpack.c.l.s4 1966171168
        %v1515 = vunpack.c.0.s8 %v1514
        %v1516 = vlaneseq
        %v1517 = vshrl.u32 %v1516, 7
        %v1518 = vsub.s32 %v1515, %v1517
        %v1519 = vrot.slane %v1511, %v1518
        %v1521 = vunpack.c.l.s4 1966171168
        %v1522 = vunpack.c.0.s8 %v1521
        %v1523 = vlaneseq
        %v1524 = vshrl.u32 %v1523, 7
        %v1525 = vsub.s32 %v1522, %v1524
        %v1526 = vrot.slane %v1512, %v1525
        %v1527 = vcombine.high %v1519, %v1519
        %v1528 = vcombine.high %v1526, %v1526
        %v1530 = vunpack.c.l.s4 1966171168
        %v1531 = vunpack.c.0.s8 %v1530
        %v1532 = vlaneseq
        %v1533 = vshrl.u32 %v1532, 7
        %v1534 = vsub.s32 %v1531, %v1533
        %v1535 = vrot.slane %v1519, %v1534
        %v1537 = vunpack.c.l.s4 1966171168
        %v1538 = vunpack.c.0.s8 %v1537
        %v1539 = vlaneseq
        %v1540 = vshrl.u32 %v1539, 7
        %v1541 = vsub.s32 %v1538, %v1540
        %v1542 = vrot.slane %v1526, %v1541
        %v1544 = vunpack.c.l.s4 1966171168
        %v1545 = vunpack.c.0.s8 %v1544
        %v1546 = vlaneseq
        %v1547 = vshrl.u32 %v1546, 7
        %v1548 = vsub.s32 %v1545, %v1547
        %v1549 = vrot.slane %v1527, %v1548
        %v1551 = vunpack.c.l.s4 1966171168
        %v1552 = vunpack.c.0.s8 %v1551
        %v1553 = vlaneseq
        %v1554 = vshrl.u32 %v1553, 7
        %v1555 = vsub.s32 %v1552, %v1554
        %v1556 = vrot.slane %v1528, %v1555
        %v1557 = vcombine.high %v1535, %v1535
        %v1558 = vcombine.high %v1542, %v1542
        %v1559 = vcombine.high %v1549, %v1549
        %v1560 = vcombine.high %v1556, %v1556
        %vm1561 = vcmp.ne.s32.totalorder %v1535, 0
        %vm1562 = vcmp.ne.s32.totalorder %v1549, 0
        %vm1563 = vcmp.ne.s32.totalorder %v1557, 0
        %vm1564 = vcmp.ne.s32.totalorder %v1559, 0
        %vm1565 = vcmp.ne.s32.totalorder %v1542, 0
        %vm1566 = vcmp.ne.s32.totalorder %v1556, 0
        %vm1567 = vcmp.ne.s32.totalorder %v1558, 0
        %vm1568 = vcmp.ne.s32.totalorder %v1560, 0
        %v1569 = vsel %vm1561, 1, 0
        %v1570 = vsel %vm1562, 1, 0
        %v1571 = vsel %vm1563, 1, 0
        %v1572 = vsel %vm1564, 1, 0
        %v1573 = vsel %vm1565, 1, 0
        %v1574 = vsel %vm1566, 1, 0
        %v1575 = vsel %vm1567, 1, 0
        %v1576 = vsel %vm1568, 1, 0
        %v1577 = vlaneseq
        %v1578 = vshrl.u32 %v1577, 7
        %v1579 = vsub.s32 0, %v1578
        %v1580 = vrot.slane %v1569, %v1579
        %v1581 = vlaneseq
        %v1582 = vshrl.u32 %v1581, 7
        %v1583 = vsub.s32 0, %v1582
        %v1584 = vrot.slane %v1570, %v1583
        %v1585 = vlaneseq
        %v1586 = vshrl.u32 %v1585, 7
        %v1587 = vsub.s32 0, %v1586
        %v1588 = vrot.slane %v1571, %v1587
        %v1589 = vlaneseq
        %v1590 = vshrl.u32 %v1589, 7
        %v1591 = vsub.s32 0, %v1590
        %v1592 = vrot.slane %v1572, %v1591
        %v1593 = vlaneseq
        %v1594 = vshrl.u32 %v1593, 7
        %v1595 = vsub.s32 0, %v1594
        %v1596 = vrot.slane %v1573, %v1595
        %v1597 = vlaneseq
        %v1598 = vshrl.u32 %v1597, 7
        %v1599 = vsub.s32 0, %v1598
        %v1600 = vrot.slane %v1574, %v1599
        %v1601 = vlaneseq
        %v1602 = vshrl.u32 %v1601, 7
        %v1603 = vsub.s32 0, %v1602
        %v1604 = vrot.slane %v1575, %v1603
        %v1605 = vlaneseq
        %v1606 = vshrl.u32 %v1605, 7
        %v1607 = vsub.s32 0, %v1606
        %v1608 = vrot.slane %v1576, %v1607
        %vm1609 = vcmp.eq.s32.totalorder %v1580, 1
        %vm1610 = vcmp.eq.s32.totalorder %v1584, 1
        %vm1611 = vcmp.eq.s32.totalorder %v1588, 1
        %vm1612 = vcmp.eq.s32.totalorder %v1592, 1
        %vm1613 = vcmp.eq.s32.totalorder %v1596, 1
        %vm1614 = vcmp.eq.s32.totalorder %v1600, 1
        %vm1615 = vcmp.eq.s32.totalorder %v1604, 1
        %vm1616 = vcmp.eq.s32.totalorder %v1608, 1
        %v1617 = vsel %vm1609, %v1269, -1e+30
        %v1618 = vsel %vm1610, %v1301, -1e+30
        %v1619 = vsel %vm1611, %v1333, -1e+30
        %v1620 = vsel %vm1612, %v1365, -1e+30
        %v1621 = vsel %vm1613, %v1397, -1e+30
        %v1622 = vsel %vm1614, %v1429, -1e+30
        %v1623 = vsel %vm1615, %v1461, -1e+30
        %v1624 = vsel %vm1616, %v1493, -1e+30
        %vm1625 = vcmask 125952
        %v1626 = vsel %vm1625, %v1617, -inf
        %1627 = vmax.xlane.f32.xlu0 %v1626
        %v1628 = vpop.xlane.xlu0 %1627
        %v1629 = vsel %vm1625, %v1618, -inf
        %1630 = vmax.xlane.f32.xlu0 %v1629
        %v1631 = vpop.xlane.xlu0 %1630
        %v1632 = vsel %vm1625, %v1619, -inf
        %1633 = vmax.xlane.f32.xlu0 %v1632
        %v1634 = vpop.xlane.xlu0 %1633
        %v1635 = vsel %vm1625, %v1620, -inf
        %1636 = vmax.xlane.f32.xlu0 %v1635
        %v1637 = vpop.xlane.xlu0 %1636
        %v1638 = vsel %vm1625, %v1621, -inf
        %1639 = vmax.xlane.f32.xlu0 %v1638
        %v1640 = vpop.xlane.xlu0 %1639
        %v1641 = vsel %vm1625, %v1622, -inf
        %1642 = vmax.xlane.f32.xlu0 %v1641
        %v1643 = vpop.xlane.xlu0 %1642
        %v1644 = vsel %vm1625, %v1623, -inf
        %1645 = vmax.xlane.f32.xlu0 %v1644
        %v1646 = vpop.xlane.xlu0 %1645
        %v1647 = vsel %vm1625, %v1624, -inf
        %1648 = vmax.xlane.f32.xlu0 %v1647
        %v1649 = vpop.xlane.xlu0 %1648
        %v1650 = vsub.f32 %v1617, %v1628
        %v1651 = vsub.f32 %v1618, %v1631
        %v1652 = vsub.f32 %v1619, %v1634
        %v1653 = vsub.f32 %v1620, %v1637
        %v1654 = vsub.f32 %v1621, %v1640
        %v1655 = vsub.f32 %v1622, %v1643
        %v1656 = vsub.f32 %v1623, %v1646
        %v1657 = vsub.f32 %v1624, %v1649
        %v1658 = vmul.f32 %v1650, 1.442695
        %v1659 = vpow.pop %v1658
        %v1660 = vmul.f32 %v1651, 1.442695
        %v1661 = vpow.pop %v1660
        %v1662 = vmul.f32 %v1652, 1.442695
        %v1663 = vpow.pop %v1662
        %v1664 = vmul.f32 %v1653, 1.442695
        %v1665 = vpow.pop %v1664
        %v1666 = vmul.f32 %v1654, 1.442695
        %v1667 = vpow.pop %v1666
        %v1668 = vmul.f32 %v1655, 1.442695
        %v1669 = vpow.pop %v1668
        %v1670 = vmul.f32 %v1656, 1.442695
        %v1671 = vpow.pop %v1670
        %v1672 = vmul.f32 %v1657, 1.442695
        %v1673 = vpow.pop %v1672
        %v1674 = vsel %vm1625, %v1659, 0.0
        %1675 = vadd.xlane.f32.xlu0 %v1674
        %v1676 = vpop.xlane.xlu0 %1675
        %v1677 = vsel %vm1625, %v1661, 0.0
        %1678 = vadd.xlane.f32.xlu0 %v1677
        %v1679 = vpop.xlane.xlu0 %1678
        %v1680 = vsel %vm1625, %v1663, 0.0
        %1681 = vadd.xlane.f32.xlu0 %v1680
        %v1682 = vpop.xlane.xlu0 %1681
        %v1683 = vsel %vm1625, %v1665, 0.0
        %1684 = vadd.xlane.f32.xlu0 %v1683
        %v1685 = vpop.xlane.xlu0 %1684
        %v1686 = vsel %vm1625, %v1667, 0.0
        %1687 = vadd.xlane.f32.xlu0 %v1686
        %v1688 = vpop.xlane.xlu0 %1687
        %v1689 = vsel %vm1625, %v1669, 0.0
        %1690 = vadd.xlane.f32.xlu0 %v1689
        %v1691 = vpop.xlane.xlu0 %1690
        %v1692 = vsel %vm1625, %v1671, 0.0
        %1693 = vadd.xlane.f32.xlu0 %v1692
        %v1694 = vpop.xlane.xlu0 %1693
        %v1695 = vsel %vm1625, %v1673, 0.0
        %1696 = vadd.xlane.f32.xlu0 %v1695
        %v1697 = vpop.xlane.xlu0 %1696
        %v1698 = vrcp.pop %v1676
        %v1699 = vrcp.pop %v1679
        %v1700 = vrcp.pop %v1682
        %v1701 = vrcp.pop %v1685
        %v1702 = vrcp.pop %v1688
        %v1703 = vrcp.pop %v1691
        %v1704 = vrcp.pop %v1694
        %v1705 = vrcp.pop %v1697
        %v1706 = vmul.f32 %v1659, %v1698
        %v1707 = vmul.f32 %v1661, %v1699
        %v1708 = vmul.f32 %v1663, %v1700
        %v1709 = vmul.f32 %v1665, %v1701
        %v1710 = vmul.f32 %v1667, %v1702
        %v1711 = vmul.f32 %v1669, %v1703
        %v1712 = vmul.f32 %v1671, %v1704
        %v1713 = vmul.f32 %v1673, %v1705
        %v1722 = vrot.slane %v1707, 7
        %vm1723 = vcmask 1041409
        %v1724 = vsel %vm1723, %v1722, %v1706
        %v1725 = vrot.slane %v1708, 6
        %vm1726 = vcmask 1042434
        %v1727 = vsel %vm1726, %v1725, %v1724
        %v1728 = vrot.slane %v1709, 5
        %vm1729 = vcmask 1043459
        %v1730 = vsel %vm1729, %v1728, %v1727
        %v1731 = vrot.slane %v1710, 4
        %vm1732 = vcmask 1044484
        %v1733 = vsel %vm1732, %v1731, %v1730
        %v1734 = vrot.slane %v1711, 3
        %vm1735 = vcmask 1045509
        %v1736 = vsel %vm1735, %v1734, %v1733
        %v1737 = vrot.slane %v1712, 2
        %vm1738 = vcmask 1046534
        %v1739 = vsel %vm1738, %v1737, %v1736
        %v1740 = vrot.slane %v1713, 1
        %vm1741 = vcmask 1047559
        %v1742 = vsel %vm1741, %v1740, %v1739
        %1745 = vrot.lane.b32.xlu0 %v592, 96
        %v1746 = vpop.permute.xlu0 %1745
        %1747 = vrot.lane.b32.xlu0 %v597, 96
        %v1748 = vpop.permute.xlu0 %1747
        %vm1751 = vcmask 130048
        %v1752 = vsel %vm1751, %v1742, 0
        %1754 = vmatprep.subr.mxu0 0.0
        %1755 = vmatpush1.msra.mxu0 0.0
        %1756 = vmatprep.subr.mxu0 0.0
        %1757 = vmatpush1.msra.mxu0 0.0
        %1758 = vmatprep.subr.mxu0 0.0
        %1759 = vmatpush1.msra.mxu0 0.0
        %1760 = vmatprep.subr.mxu0 0.0
        %1761 = vmatpush1.msra.mxu0 0.0
        %1762 = vmatprep.subr.mxu0 0.0
        %1763 = vmatpush1.msra.mxu0 0.0
        %1764 = vmatprep.subr.mxu0 0.0
        %1765 = vmatpush1.msra.mxu0 0.0
        %1766 = vmatprep.subr.mxu0 0.0
        %1767 = vmatpush1.msra.mxu0 0.0
        %1768 = vmatprep.subr.mxu0 0.0
        %1769 = vmatpush1.msra.mxu0 0.0
        %1770 = vmatprep.subr.mxu0 0.0
        %1771 = vmatpush1.msra.mxu0 0.0
        %1772 = vmatprep.subr.mxu0 0.0
        %1773 = vmatpush1.msra.mxu0 0.0
        %1774 = vmatprep.subr.mxu0 0.0
        %1775 = vmatpush1.msra.mxu0 0.0
        %1776 = vmatprep.subr.mxu0 0.0
        %1777 = vmatpush1.msra.mxu0 0.0
        %1778 = vmatprep.subr.mxu0 0.0
        %1779 = vmatpush1.msra.mxu0 0.0
        %1780 = vmatprep.subr.mxu0 0.0
        %1781 = vmatpush1.msra.mxu0 0.0
        %1782 = vmatprep.subr.mxu0 0.0
        %1783 = vmatpush1.msra.mxu0 %v1748
        %1784 = vmatprep.subr.mxu0 0.0
        %1785 = vmatpush1.msra.mxu0 %v1746
        %1786 = vmatprep.subr.mxu0 0.0
        %1787 = vmatpush2.msra.mxu0 0.0
        %1788 = vmatprep.subr.mxu0 0.0
        %1789 = vmatpush2.msra.mxu0 0.0
        %1790 = vmatprep.subr.mxu0 0.0
        %1791 = vmatpush2.msra.mxu0 0.0
        %1792 = vmatprep.subr.mxu0 0.0
        %1793 = vmatpush2.msra.mxu0 0.0
        %1794 = vmatprep.subr.mxu0 0.0
        %1795 = vmatpush2.msra.mxu0 0.0
        %1796 = vmatprep.subr.mxu0 0.0
        %1797 = vmatpush2.msra.mxu0 0.0
        %1798 = vmatprep.subr.mxu0 0.0
        %1799 = vmatpush2.msra.mxu0 0.0
        %1800 = vmatprep.subr.mxu0 0.0
        %1801 = vmatpush2.msra.mxu0 0.0
        %1802 = vmatprep.subr.mxu0 0.0
        %1803 = vmatpush2.msra.mxu0 0.0
        %1804 = vmatprep.subr.mxu0 0.0
        %1805 = vmatpush2.msra.mxu0 0.0
        %1806 = vmatprep.subr.mxu0 0.0
        %1807 = vmatpush2.msra.mxu0 0.0
        %1808 = vmatprep.subr.mxu0 0.0
        %1809 = vmatpush2.msra.mxu0 0.0
        %1810 = vmatprep.subr.mxu0 0.0
        %1811 = vmatpush2.msra.mxu0 0.0
        %1812 = vmatprep.subr.mxu0 0.0
        %1813 = vmatpush2.msra.mxu0 0.0
        %1814 = vmatprep.subr.mxu0 0.0
        %1815 = vmatpush2.msra.mxu0 0.0
        %1816 = vmatprep.subr.mxu0 0.0
        %1817 = vmatpush2.msra.mxu0 0.0
        %1818 = vmatprep.mubr.f32.mxu0 0.0
        %1819 = vmatmul.mubr.f32.gmra.mxu0 %v1752
        %v1820 = vpop.f32.mrf.mxu0
        %v1821 = vadd.f32 0.0, %v1820
        %v1822 = vpop.f32.mrf.mxu0
        %1823 = vdwg.mxu0
        %v1824 = vrot.slane %v1706, 1
        %v1825 = vsel %vm1723, %v1707, %v1824
        %v1826 = vrot.slane %v1708, 7
        %v1827 = vsel %vm1726, %v1826, %v1825
        %v1828 = vrot.slane %v1709, 6
        %v1829 = vsel %vm1729, %v1828, %v1827
        %v1830 = vrot.slane %v1710, 5
        %v1831 = vsel %vm1732, %v1830, %v1829
        %v1832 = vrot.slane %v1711, 4
        %v1833 = vsel %vm1735, %v1832, %v1831
        %v1834 = vrot.slane %v1712, 3
        %v1835 = vsel %vm1738, %v1834, %v1833
        %v1836 = vrot.slane %v1713, 2
        %v1837 = vsel %vm1741, %v1836, %v1835
        %1838 = vrot.lane.b32.xlu0 %v592, 88
        %v1839 = vpop.permute.xlu0 %1838
        %1840 = vrot.lane.b32.xlu0 %v597, 88
        %v1841 = vpop.permute.xlu0 %1840
        %v1844 = vsel %vm1751, %v1837, 0
        %1846 = vmatprep.subr.mxu0 0.0
        %1847 = vmatpush1.msra.mxu0 0.0
        %1848 = vmatprep.subr.mxu0 0.0
        %1849 = vmatpush1.msra.mxu0 0.0
        %1850 = vmatprep.subr.mxu0 0.0
        %1851 = vmatpush1.msra.mxu0 0.0
        %1852 = vmatprep.subr.mxu0 0.0
        %1853 = vmatpush1.msra.mxu0 0.0
        %1854 = vmatprep.subr.mxu0 0.0
        %1855 = vmatpush1.msra.mxu0 0.0
        %1856 = vmatprep.subr.mxu0 0.0
        %1857 = vmatpush1.msra.mxu0 0.0
        %1858 = vmatprep.subr.mxu0 0.0
        %1859 = vmatpush1.msra.mxu0 0.0
        %1860 = vmatprep.subr.mxu0 0.0
        %1861 = vmatpush1.msra.mxu0 0.0
        %1862 = vmatprep.subr.mxu0 0.0
        %1863 = vmatpush1.msra.mxu0 0.0
        %1864 = vmatprep.subr.mxu0 0.0
        %1865 = vmatpush1.msra.mxu0 0.0
        %1866 = vmatprep.subr.mxu0 0.0
        %1867 = vmatpush1.msra.mxu0 0.0
        %1868 = vmatprep.subr.mxu0 0.0
        %1869 = vmatpush1.msra.mxu0 0.0
        %1870 = vmatprep.subr.mxu0 0.0
        %1871 = vmatpush1.msra.mxu0 0.0
        %1872 = vmatprep.subr.mxu0 0.0
        %1873 = vmatpush1.msra.mxu0 0.0
        %1874 = vmatprep.subr.mxu0 0.0
        %1875 = vmatpush1.msra.mxu0 %v1841
        %1876 = vmatprep.subr.mxu0 0.0
        %1877 = vmatpush1.msra.mxu0 %v1839
        %1878 = vmatprep.subr.mxu0 0.0
        %1879 = vmatpush2.msra.mxu0 0.0
        %1880 = vmatprep.subr.mxu0 0.0
        %1881 = vmatpush2.msra.mxu0 0.0
        %1882 = vmatprep.subr.mxu0 0.0
        %1883 = vmatpush2.msra.mxu0 0.0
        %1884 = vmatprep.subr.mxu0 0.0
        %1885 = vmatpush2.msra.mxu0 0.0
        %1886 = vmatprep.subr.mxu0 0.0
        %1887 = vmatpush2.msra.mxu0 0.0
        %1888 = vmatprep.subr.mxu0 0.0
        %1889 = vmatpush2.msra.mxu0 0.0
        %1890 = vmatprep.subr.mxu0 0.0
        %1891 = vmatpush2.msra.mxu0 0.0
        %1892 = vmatprep.subr.mxu0 0.0
        %1893 = vmatpush2.msra.mxu0 0.0
        %1894 = vmatprep.subr.mxu0 0.0
        %1895 = vmatpush2.msra.mxu0 0.0
        %1896 = vmatprep.subr.mxu0 0.0
        %1897 = vmatpush2.msra.mxu0 0.0
        %1898 = vmatprep.subr.mxu0 0.0
        %1899 = vmatpush2.msra.mxu0 0.0
        %1900 = vmatprep.subr.mxu0 0.0
        %1901 = vmatpush2.msra.mxu0 0.0
        %1902 = vmatprep.subr.mxu0 0.0
        %1903 = vmatpush2.msra.mxu0 0.0
        %1904 = vmatprep.subr.mxu0 0.0
        %1905 = vmatpush2.msra.mxu0 0.0
        %1906 = vmatprep.subr.mxu0 0.0
        %1907 = vmatpush2.msra.mxu0 0.0
        %1908 = vmatprep.subr.mxu0 0.0
        %1909 = vmatpush2.msra.mxu0 0.0
        %1910 = vmatprep.mubr.f32.mxu0 0.0
        %1911 = vmatmul.mubr.f32.gmra.mxu0 %v1844
        %v1912 = vpop.f32.mrf.mxu0
        %v1913 = vadd.f32 0.0, %v1912
        %v1914 = vpop.f32.mrf.mxu0
        %1915 = vdwg.mxu0
        %v1916 = vrot.slane %v1706, 2
        %v1917 = vrot.slane %v1707, 1
        %v1918 = vsel %vm1723, %v1917, %v1916
        %v1919 = vsel %vm1726, %v1708, %v1918
        %v1920 = vrot.slane %v1709, 7
        %v1921 = vsel %vm1729, %v1920, %v1919
        %v1922 = vrot.slane %v1710, 6
        %v1923 = vsel %vm1732, %v1922, %v1921
        %v1924 = vrot.slane %v1711, 5
        %v1925 = vsel %vm1735, %v1924, %v1923
        %v1926 = vrot.slane %v1712, 4
        %v1927 = vsel %vm1738, %v1926, %v1925
        %v1928 = vrot.slane %v1713, 3
        %v1929 = vsel %vm1741, %v1928, %v1927
        %1930 = vrot.lane.b32.xlu0 %v592, 80
        %v1931 = vpop.permute.xlu0 %1930
        %1932 = vrot.lane.b32.xlu0 %v597, 80
        %v1933 = vpop.permute.xlu0 %1932
        %v1936 = vsel %vm1751, %v1929, 0
        %1938 = vmatprep.subr.mxu0 0.0
        %1939 = vmatpush1.msra.mxu0 0.0
        %1940 = vmatprep.subr.mxu0 0.0
        %1941 = vmatpush1.msra.mxu0 0.0
        %1942 = vmatprep.subr.mxu0 0.0
        %1943 = vmatpush1.msra.mxu0 0.0
        %1944 = vmatprep.subr.mxu0 0.0
        %1945 = vmatpush1.msra.mxu0 0.0
        %1946 = vmatprep.subr.mxu0 0.0
        %1947 = vmatpush1.msra.mxu0 0.0
        %1948 = vmatprep.subr.mxu0 0.0
        %1949 = vmatpush1.msra.mxu0 0.0
        %1950 = vmatprep.subr.mxu0 0.0
        %1951 = vmatpush1.msra.mxu0 0.0
        %1952 = vmatprep.subr.mxu0 0.0
        %1953 = vmatpush1.msra.mxu0 0.0
        %1954 = vmatprep.subr.mxu0 0.0
        %1955 = vmatpush1.msra.mxu0 0.0
        %1956 = vmatprep.subr.mxu0 0.0
        %1957 = vmatpush1.msra.mxu0 0.0
        %1958 = vmatprep.subr.mxu0 0.0
        %1959 = vmatpush1.msra.mxu0 0.0
        %1960 = vmatprep.subr.mxu0 0.0
        %1961 = vmatpush1.msra.mxu0 0.0
        %1962 = vmatprep.subr.mxu0 0.0
        %1963 = vmatpush1.msra.mxu0 0.0
        %1964 = vmatprep.subr.mxu0 0.0
        %1965 = vmatpush1.msra.mxu0 0.0
        %1966 = vmatprep.subr.mxu0 0.0
        %1967 = vmatpush1.msra.mxu0 %v1933
        %1968 = vmatprep.subr.mxu0 0.0
        %1969 = vmatpush1.msra.mxu0 %v1931
        %1970 = vmatprep.subr.mxu0 0.0
        %1971 = vmatpush2.msra.mxu0 0.0
        %1972 = vmatprep.subr.mxu0 0.0
        %1973 = vmatpush2.msra.mxu0 0.0
        %1974 = vmatprep.subr.mxu0 0.0
        %1975 = vmatpush2.msra.mxu0 0.0
        %1976 = vmatprep.subr.mxu0 0.0
        %1977 = vmatpush2.msra.mxu0 0.0
        %1978 = vmatprep.subr.mxu0 0.0
        %1979 = vmatpush2.msra.mxu0 0.0
        %1980 = vmatprep.subr.mxu0 0.0
        %1981 = vmatpush2.msra.mxu0 0.0
        %1982 = vmatprep.subr.mxu0 0.0
        %1983 = vmatpush2.msra.mxu0 0.0
        %1984 = vmatprep.subr.mxu0 0.0
        %1985 = vmatpush2.msra.mxu0 0.0
        %1986 = vmatprep.subr.mxu0 0.0
        %1987 = vmatpush2.msra.mxu0 0.0
        %1988 = vmatprep.subr.mxu0 0.0
        %1989 = vmatpush2.msra.mxu0 0.0
        %1990 = vmatprep.subr.mxu0 0.0
        %1991 = vmatpush2.msra.mxu0 0.0
        %1992 = vmatprep.subr.mxu0 0.0
        %1993 = vmatpush2.msra.mxu0 0.0
        %1994 = vmatprep.subr.mxu0 0.0
        %1995 = vmatpush2.msra.mxu0 0.0
        %1996 = vmatprep.subr.mxu0 0.0
        %1997 = vmatpush2.msra.mxu0 0.0
        %1998 = vmatprep.subr.mxu0 0.0
        %1999 = vmatpush2.msra.mxu0 0.0
        %2000 = vmatprep.subr.mxu0 0.0
        %2001 = vmatpush2.msra.mxu0 0.0
        %2002 = vmatprep.mubr.f32.mxu0 0.0
        %2003 = vmatmul.mubr.f32.gmra.mxu0 %v1936
        %v2004 = vpop.f32.mrf.mxu0
        %v2005 = vadd.f32 0.0, %v2004
        %v2006 = vpop.f32.mrf.mxu0
        %2007 = vdwg.mxu0
        %v2008 = vrot.slane %v1706, 3
        %v2009 = vrot.slane %v1707, 2
        %v2010 = vsel %vm1723, %v2009, %v2008
        %v2011 = vrot.slane %v1708, 1
        %v2012 = vsel %vm1726, %v2011, %v2010
        %v2013 = vsel %vm1729, %v1709, %v2012
        %v2014 = vrot.slane %v1710, 7
        %v2015 = vsel %vm1732, %v2014, %v2013
        %v2016 = vrot.slane %v1711, 6
        %v2017 = vsel %vm1735, %v2016, %v2015
        %v2018 = vrot.slane %v1712, 5
        %v2019 = vsel %vm1738, %v2018, %v2017
        %v2020 = vrot.slane %v1713, 4
        %v2021 = vsel %vm1741, %v2020, %v2019
        %2022 = vrot.lane.b32.xlu0 %v592, 72
        %v2023 = vpop.permute.xlu0 %2022
        %2024 = vrot.lane.b32.xlu0 %v597, 72
        %v2025 = vpop.permute.xlu0 %2024
        %v2028 = vsel %vm1751, %v2021, 0
        %2030 = vmatprep.subr.mxu0 0.0
        %2031 = vmatpush1.msra.mxu0 0.0
        %2032 = vmatprep.subr.mxu0 0.0
        %2033 = vmatpush1.msra.mxu0 0.0
        %2034 = vmatprep.subr.mxu0 0.0
        %2035 = vmatpush1.msra.mxu0 0.0
        %2036 = vmatprep.subr.mxu0 0.0
        %2037 = vmatpush1.msra.mxu0 0.0
        %2038 = vmatprep.subr.mxu0 0.0
        %2039 = vmatpush1.msra.mxu0 0.0
        %2040 = vmatprep.subr.mxu0 0.0
        %2041 = vmatpush1.msra.mxu0 0.0
        %2042 = vmatprep.subr.mxu0 0.0
        %2043 = vmatpush1.msra.mxu0 0.0
        %2044 = vmatprep.subr.mxu0 0.0
        %2045 = vmatpush1.msra.mxu0 0.0
        %2046 = vmatprep.subr.mxu0 0.0
        %2047 = vmatpush1.msra.mxu0 0.0
        %2048 = vmatprep.subr.mxu0 0.0
        %2049 = vmatpush1.msra.mxu0 0.0
        %2050 = vmatprep.subr.mxu0 0.0
        %2051 = vmatpush1.msra.mxu0 0.0
        %2052 = vmatprep.subr.mxu0 0.0
        %2053 = vmatpush1.msra.mxu0 0.0
        %2054 = vmatprep.subr.mxu0 0.0
        %2055 = vmatpush1.msra.mxu0 0.0
        %2056 = vmatprep.subr.mxu0 0.0
        %2057 = vmatpush1.msra.mxu0 0.0
        %2058 = vmatprep.subr.mxu0 0.0
        %2059 = vmatpush1.msra.mxu0 %v2025
        %2060 = vmatprep.subr.mxu0 0.0
        %2061 = vmatpush1.msra.mxu0 %v2023
        %2062 = vmatprep.subr.mxu0 0.0
        %2063 = vmatpush2.msra.mxu0 0.0
        %2064 = vmatprep.subr.mxu0 0.0
        %2065 = vmatpush2.msra.mxu0 0.0
        %2066 = vmatprep.subr.mxu0 0.0
        %2067 = vmatpush2.msra.mxu0 0.0
        %2068 = vmatprep.subr.mxu0 0.0
        %2069 = vmatpush2.msra.mxu0 0.0
        %2070 = vmatprep.subr.mxu0 0.0
        %2071 = vmatpush2.msra.mxu0 0.0
        %2072 = vmatprep.subr.mxu0 0.0
        %2073 = vmatpush2.msra.mxu0 0.0
        %2074 = vmatprep.subr.mxu0 0.0
        %2075 = vmatpush2.msra.mxu0 0.0
        %2076 = vmatprep.subr.mxu0 0.0
        %2077 = vmatpush2.msra.mxu0 0.0
        %2078 = vmatprep.subr.mxu0 0.0
        %2079 = vmatpush2.msra.mxu0 0.0
        %2080 = vmatprep.subr.mxu0 0.0
        %2081 = vmatpush2.msra.mxu0 0.0
        %2082 = vmatprep.subr.mxu0 0.0
        %2083 = vmatpush2.msra.mxu0 0.0
        %2084 = vmatprep.subr.mxu0 0.0
        %2085 = vmatpush2.msra.mxu0 0.0
        %2086 = vmatprep.subr.mxu0 0.0
        %2087 = vmatpush2.msra.mxu0 0.0
        %2088 = vmatprep.subr.mxu0 0.0
        %2089 = vmatpush2.msra.mxu0 0.0
        %2090 = vmatprep.subr.mxu0 0.0
        %2091 = vmatpush2.msra.mxu0 0.0
        %2092 = vmatprep.subr.mxu0 0.0
        %2093 = vmatpush2.msra.mxu0 0.0
        %2094 = vmatprep.mubr.f32.mxu0 0.0
        %2095 = vmatmul.mubr.f32.gmra.mxu0 %v2028
        %v2096 = vpop.f32.mrf.mxu0
        %v2097 = vadd.f32 0.0, %v2096
        %v2098 = vpop.f32.mrf.mxu0
        %2099 = vdwg.mxu0
        %2101 = vrot.lane.b32.xlu0 %v1913, 8
        %v2102 = vpop.permute.xlu0 %2101
        %2105 = vrot.lane.b32.xlu0 %v2005, 16
        %v2106 = vpop.permute.xlu0 %2105
        %2109 = vrot.lane.b32.xlu0 %v2097, 24
        %v2110 = vpop.permute.xlu0 %2109
        %vm2112 = vcmask 64512
        %v2113 = vsel %vm2112, %v1821, %v2102
        %v2114 = vsel %vm1751, %v2113, %v2106
        %vm2115 = vcmask 195584
        %v2116 = vsel %vm2115, %v2114, %v2110
        %v2117 = vld [vmem:[%s8] sm:$0xff]
        %v2118 = vld [vmem:[%s8 + $0x8] sm:$0xff]
        %v2119 = vld [vmem:[%s8 + $0x10] sm:$0xff]
        %v2120 = vld [vmem:[%s8 + $0x18] sm:$0xff]
        %v2121 = vld [vmem:[%s9] sm:$0x1]
        %v2123 = vlaneseq
        %v2124 = vshrl.u32 %v2123, 7
        %v2125 = vsub.s32 0, %v2124
        %v2126 = vrot.slane %v2121, %v2125
        %v2129 = vsel %vm518, %v2116, 0
        %2131 = vmatprep.subr.mxu0 0.0
        %2132 = vmatpush1.msra.mxu0 0.0
        %2133 = vmatprep.subr.mxu0 0.0
        %2134 = vmatpush1.msra.mxu0 0.0
        %2135 = vmatprep.subr.mxu0 0.0
        %2136 = vmatpush1.msra.mxu0 0.0
        %2137 = vmatprep.subr.mxu0 0.0
        %2138 = vmatpush1.msra.mxu0 0.0
        %2139 = vmatprep.subr.mxu0 0.0
        %2140 = vmatpush1.msra.mxu0 0.0
        %2141 = vmatprep.subr.mxu0 0.0
        %2142 = vmatpush1.msra.mxu0 0.0
        %2143 = vmatprep.subr.mxu0 0.0
        %2144 = vmatpush1.msra.mxu0 0.0
        %2145 = vmatprep.subr.mxu0 0.0
        %2146 = vmatpush1.msra.mxu0 0.0
        %2147 = vmatprep.subr.mxu0 0.0
        %2148 = vmatpush1.msra.mxu0 0.0
        %2149 = vmatprep.subr.mxu0 0.0
        %2150 = vmatpush1.msra.mxu0 0.0
        %2151 = vmatprep.subr.mxu0 0.0
        %2152 = vmatpush1.msra.mxu0 0.0
        %2153 = vmatprep.subr.mxu0 0.0
        %2154 = vmatpush1.msra.mxu0 0.0
        %2155 = vmatprep.subr.mxu0 0.0
        %2156 = vmatpush1.msra.mxu0 %v2120
        %2157 = vmatprep.subr.mxu0 0.0
        %2158 = vmatpush1.msra.mxu0 %v2119
        %2159 = vmatprep.subr.mxu0 0.0
        %2160 = vmatpush1.msra.mxu0 %v2118
        %2161 = vmatprep.subr.mxu0 0.0
        %2162 = vmatpush1.msra.mxu0 %v2117
        %2163 = vmatprep.subr.mxu0 0.0
        %2164 = vmatpush2.msra.mxu0 0.0
        %2165 = vmatprep.subr.mxu0 0.0
        %2166 = vmatpush2.msra.mxu0 0.0
        %2167 = vmatprep.subr.mxu0 0.0
        %2168 = vmatpush2.msra.mxu0 0.0
        %2169 = vmatprep.subr.mxu0 0.0
        %2170 = vmatpush2.msra.mxu0 0.0
        %2171 = vmatprep.subr.mxu0 0.0
        %2172 = vmatpush2.msra.mxu0 0.0
        %2173 = vmatprep.subr.mxu0 0.0
        %2174 = vmatpush2.msra.mxu0 0.0
        %2175 = vmatprep.subr.mxu0 0.0
        %2176 = vmatpush2.msra.mxu0 0.0
        %2177 = vmatprep.subr.mxu0 0.0
        %2178 = vmatpush2.msra.mxu0 0.0
        %2179 = vmatprep.subr.mxu0 0.0
        %2180 = vmatpush2.msra.mxu0 0.0
        %2181 = vmatprep.subr.mxu0 0.0
        %2182 = vmatpush2.msra.mxu0 0.0
        %2183 = vmatprep.subr.mxu0 0.0
        %2184 = vmatpush2.msra.mxu0 0.0
        %2185 = vmatprep.subr.mxu0 0.0
        %2186 = vmatpush2.msra.mxu0 0.0
        %2187 = vmatprep.subr.mxu0 0.0
        %2188 = vmatpush2.msra.mxu0 0.0
        %2189 = vmatprep.subr.mxu0 0.0
        %2190 = vmatpush2.msra.mxu0 0.0
        %2191 = vmatprep.subr.mxu0 0.0
        %2192 = vmatpush2.msra.mxu0 0.0
        %2193 = vmatprep.subr.mxu0 0.0
        %2194 = vmatpush2.msra.mxu0 0.0
        %2195 = vmatprep.mubr.f32.mxu0 0.0
        %2196 = vmatmul.mubr.f32.gmra.mxu0 %v2129
        %v2197 = vpop.f32.mrf.mxu0
        %v2198 = vadd.f32 %v2126, %v2197
        %v2199 = vpop.f32.mrf.mxu0
        %2200 = vdwg.mxu0
        %2201 = vst.msk [vmem:[%s464] sm:$0xff] %vm518, %v2198
        %s2202 = sand.u32 %s306, 1
        %s2203 = scalar_lea.sflag [#allocation3], %s2202
        %s2204 = sand.u32 %s306, 1
        %s2205 = smul.addr %s2204, 8
        %s2206 = scalar_lea.vmem [#allocation2], %s2205
        %s2207 = sand.u32 %s332, 1
        %s2208 = scalar_lea.sflag [#allocation5], %s2207
        %s2209 = sand.u32 %s332, 1
        %s2210 = smul.addr %s2209, 128
        %s2211 = scalar_lea.vmem [#allocation4], %s2210
        // Predicated region
        $region69: #{tpu_custom_call.1} parent=67 // pred_check
          %p2212 = pneg %p316
        $region70: #{tpu_custom_call.1} parent=67 // pred_check_branch
          %2214 = sbr.rel (%p2212) target = $region72
        $region71: #{tpu_custom_call.1} parent=67 // pred_region
          %s2216 = ssub.s32 128, 128
          %2217 = vsyncadd %s2203, %s2216
          %s2218 = smul.addr %s31, 128
          %s2219 = scalar_lea.hbm %s12, %s2218
          %s2221 = sshll.u32 %s2206, 4
          %s2222 = int_to_ptr.vmem [resolvable:$true] %s2221
          %2224 = dma.vmem_to_hbm [thread:$0]  %s2222, 128, %s2219, %s2203
        $region72: #{tpu_custom_call.1} parent=67 // pred_fallthru
          _
        // Predicated region
        $region73: #{tpu_custom_call.1} parent=67 // pred_check
          %p2225 = pneg %p342
        $region74: #{tpu_custom_call.1} parent=67 // pred_check_branch
          %2227 = sbr.rel (%p2225) target = $region76
        $region75: #{tpu_custom_call.1} parent=67 // pred_region
          %s2228 = smul.u32 16, %s31
          %s2230 = ssub.s32 2048, 2048
          %2231 = vsyncadd %s2208, %s2230
          %s2232 = smul.addr %s2228, 128
          %s2233 = scalar_lea.hbm %s13, %s2232
          %s2234 = sshll.u32 %s2211, 4
          %s2235 = int_to_ptr.vmem [resolvable:$true] %s2234
          %2240 = dma.vmem_to_hbm [thread:$0]  %s2235, 2048, %s2233, %s2208, 128, 128, 8
        $region76: #{tpu_custom_call.1} parent=67 // pred_fallthru
          _
      $region68: #{tpu_custom_call.1} parent=5 // pred_fallthru
        _
      %p2241 = scmp.le.s32.totalorder 2, %s26
      // Predicated region
      $region77: #{tpu_custom_call.1} parent=5 // pred_check
        %p2242 = pneg %p2241
      $region78: #{tpu_custom_call.1} parent=5 // pred_check_branch
        %2244 = sbr.rel (%p2242) target = $region80
      $region79: #{tpu_custom_call.1} parent=5 // pred_region
        %s2245 = ssub.s32 %s26, 2
        // Predicated region
        $region81: #{tpu_custom_call.1} parent=79 // pred_check
          %p2246 = pneg %p322
        $region82: #{tpu_custom_call.1} parent=79 // pred_check_branch
          %2248 = sbr.rel (%p2246) target = $region84
        $region83: #{tpu_custom_call.1} parent=79 // pred_region
          %s2249 = sand.u32 %s307, 1
          %s2250 = scalar_lea.sflag [#allocation3], %s2249
          %s2251 = sand.u32 %s307, 1
          %s2252 = smul.addr %s2251, 8
          %s2253 = scalar_lea.vmem [#allocation2], %s2252
          %2254 = dma.done %s2250, 128
        $region84: #{tpu_custom_call.1} parent=79 // pred_fallthru
          _
        // Predicated region
        $region85: #{tpu_custom_call.1} parent=79 // pred_check
          %p2255 = pneg %p348
        $region86: #{tpu_custom_call.1} parent=79 // pred_check_branch
          %2257 = sbr.rel (%p2255) target = $region88
        $region87: #{tpu_custom_call.1} parent=79 // pred_region
          %s2258 = sand.u32 %s333, 1
          %s2259 = scalar_lea.sflag [#allocation5], %s2258
          %s2260 = sand.u32 %s333, 1
          %s2261 = smul.addr %s2260, 128
          %s2262 = scalar_lea.vmem [#allocation4], %s2261
          %2263 = dma.done %s2259, 2048
        $region88: #{tpu_custom_call.1} parent=79 // pred_fallthru
          _
      $region80: #{tpu_custom_call.1} parent=5 // pred_fallthru
        _
    $region6: #{tpu_custom_call.1} parent=1 // loop_footer
      %s30 = sadd.s32 1, %s26
    $region7: #{tpu_custom_call.1} parent=1 // loop_footer_branch
      %25 = sbr.rel target = $region3
    $region8: #{tpu_custom_call.1} parent=1 // loop_exit
      _
    %2264 = vsyncpa [#allocation3], 1
    %s2265 = scalar_lea.sflag [#allocation3], 1
    %2266 = vsyncpa %s2265, 1
    %2267 = vsyncpa [#allocation5], 1
    %s2268 = scalar_lea.sflag [#allocation5], 1
    %2269 = vsyncpa %s2268, 1

</llo_original>
